<compile_context>
chip_gen: v7x
topology: tpu7x:2x2x1
jax: 0.10.0
libtpu: 0.0.40
codegen_flags: <defaults>
</compile_context>

<pallas_src>
import functools

import jax
import jax.numpy as jnp
from jax.experimental import pallas as pl
from jax.experimental.pallas import tpu as pltpu


# ----------------------------------------------------------------------------
# Hardware-aware tile / VMEM policy.
# ----------------------------------------------------------------------------
def _round_up(x, m):
    return ((x + m - 1) // m) * m


def _device_kind():
    try:
        return jax.devices()[0].device_kind
    except Exception:
        return ""


def _tpu_vmem_capacity_bytes():
    try:
        info = pltpu.get_tpu_info()
        cap = int(getattr(info, "vmem_capacity_bytes", 0) or 0)
        if cap > 0:
            return cap
    except Exception:
        pass
    return 64 * 1024 * 1024  # conservative (v7x-sized) default


def _vmem_budget_bytes():
    cap = _tpu_vmem_capacity_bytes()
    if cap >= 100 * 1024 * 1024:                       # v5e / v6e: 128 MiB physical
        return 100 * 1024 * 1024
    # v7x: 64 MiB physical -> leave headroom for Mosaic internal scratch
    return min(56 * 1024 * 1024, max(cap - 8 * 1024 * 1024, 32 * 1024 * 1024))


def _estimate_vmem_bytes(S, bt, I, H, O, L):
    bf, f4 = 2, 4
    need = 2 * S * bt * I * bf                         # x block (double-buffered)
    for layer in range(L):                             # weights: single-buffered
        in_dim = I if layer == 0 else H
        need += (in_dim * 4 * H + H * 4 * H) * bf + 4 * H * f4
    need += H * O * bf + O * f4                        # head weights (single-buffered)
    need += 2 * 2 * L * bt * H * f4                    # h0 / c0 blocks
    need += 2 * (bt * O * f4 + 2 * L * bt * H * f4)    # output blocks
    need += (S * bt * H * bf) if L > 1 else 8 * 128 * bf   # inter-layer seq (bf16)
    need += S * bt * 4 * H * bf                        # hoisted gate scratch (bf16)
    return need


def _pick_batch_tile(B, S, I, H, O, L, device_kind, vmem_budget):
    kind = device_kind.lower()
    is_v5e = ("v5e" in kind) or ("v5 lite" in kind) or ("v5lite" in kind)
    is_v7 = "7" in kind
    cap = 128 if is_v5e else 256          # MXU rows: 128 on v5e, 256 on v6e/v7x
    if is_v7 and B >= 16:
        bt = _round_up(pl.cdiv(B, 2), 8)  # exactly 2 tiles -> one per TensorCore
    else:
        bt = _round_up(B, 8)
    bt = max(8, min(bt, cap))
    # Shrink (multiples of 8) until the resident working set fits VMEM.
    while bt > 8 and _estimate_vmem_bytes(S, bt, I, H, O, L) > int(0.9 * vmem_budget):
        bt = max(8, _round_up(bt // 2, 8))
    return bt


# ----------------------------------------------------------------------------
# Fused kernel: all LSTM layers + linear head + log-softmax.
# Ref order: x, (w_ih, w_hh, bias) x L, w_lin, b_lin, h0, c0,
#            out, hN, cN, seq_scratch, gate_scratch
# ----------------------------------------------------------------------------
def _fused_lstm_kernel(num_layer, n_sub, *refs):
    it = iter(refs)
    x_ref = next(it)                                        # (S, Bt, I)  bf16
    layer_w = [(next(it), next(it), next(it)) for _ in range(num_layer)]
    w_lin_ref = next(it)                                    # (H, O)      bf16
    b_lin_ref = next(it)                                    # (1, O)      f32
    h0_ref = next(it)                                       # (L, Bt, H)  f32
    c0_ref = next(it)                                       # (L, Bt, H)  f32
    out_ref = next(it)                                      # (Bt, O)     f32
    hN_ref = next(it)                                       # (L, Bt, H)  f32
    cN_ref = next(it)                                       # (L, Bt, H)  f32
    seq_scr = next(it)                                      # (S, Bt, H)  bf16
    gx_scr = next(it)                                       # (S, Bt, 4H) bf16

    S, Bt, _ = x_ref.shape
    H = h0_ref.shape[2]
    sub = Bt // n_sub

    hs_fin = None
    for layer in range(num_layer):
        w_ih_ref, w_hh_ref, b_ref = layer_w[layer]
        last = layer == num_layer - 1

        # --- Hoisted input projection: ONE big MXU matmul over all steps. ---
        # TODO(synk): for production sizes pad I/H/O to multiples of 128 so
        # this reshape is a free view and the gate slices are lane-aligned.
        xin = x_ref[...] if layer == 0 else seq_scr[...]
        in_dim = xin.shape[-1]
        gx = jnp.dot(xin.reshape(S * Bt, in_dim).astype(jnp.bfloat16),
                     w_ih_ref[...],                          # (in_dim, 4H) bf16
                     preferred_element_type=jnp.float32)
        gx_scr[...] = gx.reshape(S, Bt, 4 * H).astype(gx_scr.dtype)   # bf16 staging

        w_hh = w_hh_ref[...]                                 # (H, 4H) bf16, once
        bias_b = jnp.broadcast_to(b_ref[...], (sub, 4 * H))  # f32, hoisted

        # --- Sequential recurrence: only h @ W_hh per step (f32 state). -----
        def cell_step(t, carry):
            hs, cs = carry
            gx_t = gx_scr[t]                                 # (Bt, 4H) bf16
            # Issue the n_sub independent matmuls first so the scheduler can
            # overlap sub-tile p's MXU push with sub-tile p-1's gate math.
            gates = []
            for p in range(n_sub):
                gxp = gx_t if n_sub == 1 else gx_t[p * sub:(p + 1) * sub]
                gates.append(
                    jnp.dot(hs[p].astype(jnp.bfloat16), w_hh,
                            preferred_element_type=jnp.float32)
                    + gxp.astype(jnp.float32) + bias_b)      # bias add stays f32
            new_hs, new_cs = [], []
            for p in range(n_sub):
                g = gates[p]
                i_g = jax.nn.sigmoid(g[:, 0 * H:1 * H])
                f_g = jax.nn.sigmoid(g[:, 1 * H:2 * H])
                g_g = jnp.tanh(g[:, 2 * H:3 * H])
                o_g = jax.nn.sigmoid(g[:, 3 * H:4 * H])
                c_new = f_g * cs[p] + i_g * g_g
                h_new = o_g * jnp.tanh(c_new)
                if not last:                                 # next layer's input
                    if n_sub == 1:
                        seq_scr[t] = h_new.astype(seq_scr.dtype)
                    else:
                        seq_scr[t, p * sub:(p + 1) * sub] = h_new.astype(seq_scr.dtype)
                new_hs.append(h_new)
                new_cs.append(c_new)
            return tuple(new_hs), tuple(new_cs)

        h0_l = h0_ref[layer]
        c0_l = c0_ref[layer]
        init = (tuple(h0_l[p * sub:(p + 1) * sub] for p in range(n_sub)),
                tuple(c0_l[p * sub:(p + 1) * sub] for p in range(n_sub)))

        # Manually unrolled recurrence: U steps per fori iteration lets the
        # scheduler overlap step t+1's gx load / seq store with step t's
        # MXU + EUP gate math and removes per-step scalar loop overhead.
        U = min(4, S)
        n_main = S // U

        def outer_step(j, carry):
            for u in range(U):
                carry = cell_step(j * U + u, carry)
            return carry

        carry = jax.lax.fori_loop(0, n_main, outer_step, init)
        for t in range(n_main * U, S):                       # remainder, inline
            carry = cell_step(t, carry)

        hs_fin, cs_fin = carry
        h_fin = hs_fin[0] if n_sub == 1 else jnp.concatenate(hs_fin, axis=0)
        c_fin = cs_fin[0] if n_sub == 1 else jnp.concatenate(cs_fin, axis=0)
        hN_ref[layer] = h_fin
        cN_ref[layer] = c_fin

    # --- Head: linear + log-softmax on last timestep of last layer. ---------
    w_lin = w_lin_ref[...]
    b_lin = b_lin_ref[...]
    for p in range(n_sub):
        logits = jnp.dot(hs_fin[p].astype(jnp.bfloat16), w_lin,
                         preferred_element_type=jnp.float32) + b_lin
        m = jnp.max(logits, axis=1, keepdims=True)
        z = logits - m
        lse = jnp.log(jnp.sum(jnp.exp(z), axis=1, keepdims=True))
        if n_sub == 1:
            out_ref[...] = z - lse
        else:
            out_ref[p * sub:(p + 1) * sub, :] = z - lse


# ----------------------------------------------------------------------------
# Wrapper.
# ----------------------------------------------------------------------------
def lstm_forward_pallas(inputs, hidden, cell, params):
    """inputs (S,B,I) f32; hidden/cell (L,B,H) f32 -> (output, hidden, cell)."""
    S, B, I = inputs.shape
    L, _, H = hidden.shape
    w_lin, b_lin = params["linear"]
    O = w_lin.shape[0]

    budget = _vmem_budget_bytes()
    bt = _pick_batch_tile(B, S, I, H, O, L, _device_kind(), budget)
    nb = pl.cdiv(B, bt)
    B_pad = nb * bt
    n_sub = 2 if (bt >= 16 and (bt // 2) % 8 == 0) else 1

    if B_pad != B:                                   # masked last tile via zero-pad
        pad = B_pad - B
        inputs = jnp.pad(inputs, ((0, 0), (0, pad), (0, 0)))
        hidden = jnp.pad(hidden, ((0, 0), (0, pad), (0, 0)))
        cell = jnp.pad(cell, ((0, 0), (0, pad), (0, 0)))

    # Pre-transpose to (K, N) MXU layout + cast to bf16 outside the kernel.
    # Weights/bias have a constant index_map -> keep a SINGLE VMEM buffer.
    def wspec(shape):
        return pl.BlockSpec(shape, lambda b: (0, 0), pipeline_mode=pl.Buffered(1))

    flat_inputs = [inputs.astype(jnp.bfloat16)]
    in_specs = [pl.BlockSpec((S, bt, I), lambda b: (0, b, 0))]
    for layer in range(L):
        w_ih, w_hh, bias = params["lstm"][layer]
        in_dim = w_ih.shape[1]
        flat_inputs += [w_ih.T.astype(jnp.bfloat16),
                        w_hh.T.astype(jnp.bfloat16),
                        bias.astype(jnp.float32)]
        in_specs += [wspec((in_dim, 4 * H)), wspec((H, 4 * H)), wspec((1, 4 * H))]
    flat_inputs += [w_lin.T.astype(jnp.bfloat16), b_lin.astype(jnp.float32),
                    hidden.astype(jnp.float32), cell.astype(jnp.float32)]
    in_specs += [wspec((H, O)), wspec((1, O)),
                 pl.BlockSpec((L, bt, H), lambda b: (0, b, 0)),
                 pl.BlockSpec((L, bt, H), lambda b: (0, b, 0))]

    out_shapes = (
        jax.ShapeDtypeStruct((B_pad, O), jnp.float32),
        jax.ShapeDtypeStruct((L, B_pad, H), jnp.float32),
        jax.ShapeDtypeStruct((L, B_pad, H), jnp.float32),
    )
    out_specs = (
        pl.BlockSpec((bt, O), lambda b: (b, 0)),
        pl.BlockSpec((L, bt, H), lambda b: (0, b, 0)),
        pl.BlockSpec((L, bt, H), lambda b: (0, b, 0)),
    )
    scratch_shapes = [
        # inter-layer sequence (bf16); tiny dummy when there is only one layer
        pltpu.VMEM((S, bt, H) if L > 1 else (1, bt, H), jnp.bfloat16),
        # hoisted gate inputs, staged in bf16 (bias re-added in f32 per step)
        pltpu.VMEM((S, bt, 4 * H), jnp.bfloat16),
    ]

    out, hN, cN = pl.pallas_call(
        functools.partial(_fused_lstm_kernel, L, n_sub),
        out_shape=out_shapes,
        grid_spec=pltpu.PrefetchScalarGridSpec(
            num_scalar_prefetch=0,
            grid=(nb,),
            in_specs=in_specs,
            out_specs=out_specs,
            scratch_shapes=scratch_shapes),
        compiler_params=pltpu.CompilerParams(
            dimension_semantics=("parallel",),
            vmem_limit_bytes=budget),
    )(*flat_inputs)

    if B_pad != B:
        out, hN, cN = out[:B], hN[:, :B], cN[:, :B]
    return out, hN, cN


lstm_forward = jax.jit(lstm_forward_pallas)


# ----------------------------------------------------------------------------
# Parameters (PyTorch layout) and a pure-JAX reference (same bf16 matmul math).
# ----------------------------------------------------------------------------
def init_params(key, input_size, hidden_size, output_size, num_layer):
    params = {"lstm": [], "linear": None}
    scale = 1.0 / jnp.sqrt(hidden_size)
    for layer in range(num_layer):
        in_dim = input_size if layer == 0 else hidden_size
        key, k1, k2, k3, k4 = jax.random.split(key, 5)
        w_ih = jax.random.uniform(k1, (4 * hidden_size, in_dim),
                                  jnp.float32, -scale, scale)
        w_hh = jax.random.uniform(k2, (4 * hidden_size, hidden_size),
                                  jnp.float32, -scale, scale)
        b_ih = jax.random.uniform(k3, (4 * hidden_size,), jnp.float32, -scale, scale)
        b_hh = jax.random.uniform(k4, (4 * hidden_size,), jnp.float32, -scale, scale)
        bias = (b_ih + b_hh).reshape(1, 4 * hidden_size)
        params["lstm"].append((w_ih, w_hh, bias))
    key, k1, k2 = jax.random.split(key, 3)
    w_lin = jax.random.uniform(k1, (output_size, hidden_size),
                               jnp.float32, -scale, scale)
    b_lin = jax.random.uniform(k2, (1, output_size), jnp.float32, -scale, scale)
    params["linear"] = (w_lin, b_lin)
    return params


def reference_forward(inputs, hidden, cell, params):
    S, B, _ = inputs.shape
    x = inputs
    hs, cs = [], []
    for layer, (w_ih, w_hh, bias) in enumerate(params["lstm"]):
        H = w_hh.shape[1]
        wih_t = w_ih.T.astype(jnp.bfloat16)
        whh_t = w_hh.T.astype(jnp.bfloat16)
        gx = jnp.dot(x.astype(jnp.bfloat16).reshape(S * B, -1), wih_t,
                     preferred_element_type=jnp.float32)
        gx = gx.reshape(S, B, 4 * H).astype(jnp.bfloat16)   # mimic bf16 gate staging
        h, c = hidden[layer], cell[layer]
        outs = []
        for t in range(S):
            g = (jnp.dot(h.astype(jnp.bfloat16), whh_t,
                         preferred_element_type=jnp.float32)
                 + gx[t].astype(jnp.float32) + bias)
            i_g = jax.nn.sigmoid(g[:, 0 * H:1 * H])
            f_g = jax.nn.sigmoid(g[:, 1 * H:2 * H])
            g_g = jnp.tanh(g[:, 2 * H:3 * H])
            o_g = jax.nn.sigmoid(g[:, 3 * H:4 * H])
            c = f_g * c + i_g * g_g
            h = o_g * jnp.tanh(c)
            outs.append(h)
        x = jnp.stack(outs, axis=0)
        hs.append(h)
        cs.append(c)
    w_lin, b_lin = params["linear"]
    logits = jnp.dot(h.astype(jnp.bfloat16), w_lin.T.astype(jnp.bfloat16),
                     preferred_element_type=jnp.float32) + b_lin
    return jax.nn.log_softmax(logits, axis=1), jnp.stack(hs, 0), jnp.stack(cs, 0)


if __name__ == "__main__":
    input_size = 32
    hidden_size = 32
    output_size = 16
    batch_size = 8
    num_layer = 2
    seq_len = 8

    key = jax.random.PRNGKey(0)
    key, k_in = jax.random.split(key)
    inputs = jax.random.normal(k_in, (seq_len, batch_size, input_size), jnp.float32)

    # init_hidden(): zeros of shape (num_layer, batch, hidden)
    hidden = jnp.zeros((num_layer, batch_size, hidden_size), jnp.float32)
    cell = jnp.zeros((num_layer, batch_size, hidden_size), jnp.float32)

    params = init_params(key, input_size, hidden_size, output_size, num_layer)

    output, h_n, c_n = lstm_forward(inputs, hidden, cell, params)
    jax.block_until_ready((output, h_n, c_n))

    assert output.shape == (batch_size, output_size)
    assert h_n.shape == (num_layer, batch_size, hidden_size)
    assert c_n.shape == (num_layer, batch_size, hidden_size)
    # log-softmax sanity: rows sum to 1 in prob space
    assert bool(jnp.allclose(jnp.sum(jnp.exp(output), axis=1), 1.0, atol=1e-4))

    # Numerical check against a pure-JAX reference using the same bf16 matmul
    # (f32 accumulate) math.
    ref_out, ref_h, ref_c = reference_forward(inputs, hidden, cell, params)
    assert bool(jnp.allclose(output, ref_out, atol=1e-2, rtol=1e-2))
    assert bool(jnp.allclose(h_n, ref_h, atol=1e-2, rtol=1e-2))
    assert bool(jnp.allclose(c_n, ref_c, atol=1e-2, rtol=1e-2))

    print("KERNEL_OK")
</pallas_src>

<mosaic_0001>
module attributes {stable_mosaic.version = 11 : i64} {
  func.func @_fused_lstm_kernel(%arg0: i32, %arg1: memref<8x8x32xbf16, #tpu.memory_space<vmem>>, %arg2: memref<32x128xbf16, #tpu.memory_space<vmem>>, %arg3: memref<32x128xbf16, #tpu.memory_space<vmem>>, %arg4: memref<1x128xf32, #tpu.memory_space<vmem>>, %arg5: memref<32x128xbf16, #tpu.memory_space<vmem>>, %arg6: memref<32x128xbf16, #tpu.memory_space<vmem>>, %arg7: memref<1x128xf32, #tpu.memory_space<vmem>>, %arg8: memref<32x16xbf16, #tpu.memory_space<vmem>>, %arg9: memref<1x16xf32, #tpu.memory_space<vmem>>, %arg10: memref<2x8x32xf32, #tpu.memory_space<vmem>>, %arg11: memref<2x8x32xf32, #tpu.memory_space<vmem>>, %arg12: memref<8x16xf32, #tpu.memory_space<vmem>>, %arg13: memref<2x8x32xf32, #tpu.memory_space<vmem>>, %arg14: memref<2x8x32xf32, #tpu.memory_space<vmem>>, %arg15: memref<8x8x32xbf16, #tpu.memory_space<vmem>>, %arg16: memref<8x8x128xbf16, #tpu.memory_space<vmem>>) attributes {dimension_semantics = [#tpu.dimension_semantics<parallel>], iteration_bounds = array<i64: 1>, scalar_prefetch = 0 : i64, scratch_operands = 2 : i64, tpu.core_type = #tpu.core_type<tc>, window_params = [{transform_indices = @transform_0, window_bounds = array<i64: 8, 8, 32>}, {pipeline_mode = #tpu.pipeline_mode<synchronous>, transform_indices = @transform_1, window_bounds = array<i64: 32, 128>}, {pipeline_mode = #tpu.pipeline_mode<synchronous>, transform_indices = @transform_2, window_bounds = array<i64: 32, 128>}, {pipeline_mode = #tpu.pipeline_mode<synchronous>, transform_indices = @transform_3, window_bounds = array<i64: 1, 128>}, {pipeline_mode = #tpu.pipeline_mode<synchronous>, transform_indices = @transform_4, window_bounds = array<i64: 32, 128>}, {pipeline_mode = #tpu.pipeline_mode<synchronous>, transform_indices = @transform_5, window_bounds = array<i64: 32, 128>}, {pipeline_mode = #tpu.pipeline_mode<synchronous>, transform_indices = @transform_6, window_bounds = array<i64: 1, 128>}, {pipeline_mode = #tpu.pipeline_mode<synchronous>, transform_indices = @transform_7, window_bounds = array<i64: 32, 16>}, {pipeline_mode = #tpu.pipeline_mode<synchronous>, transform_indices = @transform_8, window_bounds = array<i64: 1, 16>}, {transform_indices = @transform_9, window_bounds = array<i64: 2, 8, 32>}, {transform_indices = @transform_10, window_bounds = array<i64: 2, 8, 32>}, {transform_indices = @transform_11, window_bounds = array<i64: 8, 16>}, {transform_indices = @transform_12, window_bounds = array<i64: 2, 8, 32>}, {transform_indices = @transform_13, window_bounds = array<i64: 2, 8, 32>}]} {
    %c0 = arith.constant 0 : index
    %c0_0 = arith.constant 0 : index
    %c0_1 = arith.constant 0 : index
    %0 = vector.load %arg1[%c0, %c0_0, %c0_1] : memref<8x8x32xbf16, #tpu.memory_space<vmem>>, vector<8x8x32xbf16>
    %1 = vector.shape_cast %0 : vector<8x8x32xbf16> to vector<64x32xbf16>
    %c0_2 = arith.constant 0 : index
    %c0_3 = arith.constant 0 : index
    %2 = vector.load %arg2[%c0_2, %c0_3] : memref<32x128xbf16, #tpu.memory_space<vmem>>, vector<32x128xbf16>
    %cst = arith.constant dense<0.000000e+00> : vector<64x128xf32>
    %3 = tpu.matmul %1, %2, %cst {dimension_numbers = #tpu.dot_dimension_numbers<[1], [0], [0], [1], [0, 0, 1, 1], [], []>} : vector<64x32xbf16>, vector<32x128xbf16>, vector<64x128xf32> -> vector<64x128xf32>
    %4 = vector.shape_cast %3 : vector<64x128xf32> to vector<8x8x128xf32>
    %5 = arith.truncf %4 : vector<8x8x128xf32> to vector<8x8x128xbf16>
    %c0_4 = arith.constant 0 : index
    %c0_5 = arith.constant 0 : index
    %c0_6 = arith.constant 0 : index
    %6 = vector.load %arg16[%c0_4, %c0_5, %c0_6] : memref<8x8x128xbf16, #tpu.memory_space<vmem>>, vector<8x8x128xbf16>
    tpu.vector_store %arg16[%c0_4, %c0_5, %c0_6], %5 {strides = array<i32>} : memref<8x8x128xbf16, #tpu.memory_space<vmem>>, vector<8x8x128xbf16>,
    %c0_7 = arith.constant 0 : index
    %c0_8 = arith.constant 0 : index
    %7 = vector.load %arg3[%c0_7, %c0_8] : memref<32x128xbf16, #tpu.memory_space<vmem>>, vector<32x128xbf16>
    %c0_9 = arith.constant 0 : index
    %c0_10 = arith.constant 0 : index
    %8 = vector.load %arg4[%c0_9, %c0_10] : memref<1x128xf32, #tpu.memory_space<vmem>>, vector<1x128xf32>
    %9 = vector.shape_cast %8 : vector<1x128xf32> to vector<1x128xf32>
    %10 = vector.broadcast %9 : vector<1x128xf32> to vector<8x128xf32>
    %c0_11 = arith.constant 0 : index
    %c0_12 = arith.constant 0 : index
    %c0_13 = arith.constant 0 : index
    %11 = vector.load %arg10[%c0_11, %c0_12, %c0_13] : memref<2x8x32xf32, #tpu.memory_space<vmem>>, vector<1x8x32xf32>
    %12 = vector.shape_cast %11 : vector<1x8x32xf32> to vector<8x32xf32>
    %c0_14 = arith.constant 0 : index
    %c0_15 = arith.constant 0 : index
    %c0_16 = arith.constant 0 : index
    %13 = vector.load %arg11[%c0_14, %c0_15, %c0_16] : memref<2x8x32xf32, #tpu.memory_space<vmem>>, vector<1x8x32xf32>
    %14 = vector.shape_cast %13 : vector<1x8x32xf32> to vector<8x32xf32>
    %c0_i32 = arith.constant 0 : i32
    %c2_i32 = arith.constant 2 : i32
    %15 = arith.addi %c0_i32, %c2_i32 : i32
    %c1_i32 = arith.constant 1 : i32
    %16:2 = scf.for %arg17 = %c0_i32 to %15 step %c1_i32 iter_args(%arg18 = %12, %arg19 = %14) -> (vector<8x32xf32>, vector<8x32xf32>)  : i32 {
      %c4_i32 = arith.constant 4 : i32
      %63 = arith.muli %arg17, %c4_i32 : i32
      %c0_i32_61 = arith.constant 0 : i32
      %64 = arith.addi %63, %c0_i32_61 : i32
      %65 = arith.index_cast %64 : i32 to index
      %c0_62 = arith.constant 0 : index
      %c0_63 = arith.constant 0 : index
      %66 = vector.load %arg16[%65, %c0_62, %c0_63] : memref<8x8x128xbf16, #tpu.memory_space<vmem>>, vector<1x8x128xbf16>
      %67 = vector.shape_cast %66 : vector<1x8x128xbf16> to vector<8x128xbf16>
      %68 = arith.truncf %arg18 : vector<8x32xf32> to vector<8x32xbf16>
      %cst_64 = arith.constant dense<0.000000e+00> : vector<8x128xf32>
      %69 = tpu.matmul %68, %7, %cst_64 {dimension_numbers = #tpu.dot_dimension_numbers<[1], [0], [0], [1], [0, 0, 1, 1], [], []>} : vector<8x32xbf16>, vector<32x128xbf16>, vector<8x128xf32> -> vector<8x128xf32>
      %70 = arith.extf %67 : vector<8x128xbf16> to vector<8x128xf32>
      %71 = arith.addf %69, %70 : vector<8x128xf32>
      %72 = arith.addf %71, %10 : vector<8x128xf32>
      %73 = vector.extract_strided_slice %72 {offsets = [0, 0], sizes = [8, 32], strides = [1, 1]} : vector<8x128xf32> to vector<8x32xf32>
      %74 = arith.negf %73 : vector<8x32xf32>
      %75 = math.exp %74 : vector<8x32xf32>
      %cst_65 = arith.constant 1.000000e+00 : f32
      %76 = vector.broadcast %cst_65 : f32 to vector<8x32xf32>
      %77 = arith.addf %76, %75 : vector<8x32xf32>
      %78 = arith.divf %76, %77 : vector<8x32xf32>
      %79 = vector.extract_strided_slice %72 {offsets = [0, 32], sizes = [8, 32], strides = [1, 1]} : vector<8x128xf32> to vector<8x32xf32>
      %80 = arith.negf %79 : vector<8x32xf32>
      %81 = math.exp %80 : vector<8x32xf32>
      %cst_66 = arith.constant 1.000000e+00 : f32
      %82 = vector.broadcast %cst_66 : f32 to vector<8x32xf32>
      %83 = arith.addf %82, %81 : vector<8x32xf32>
      %84 = arith.divf %82, %83 : vector<8x32xf32>
      %85 = vector.extract_strided_slice %72 {offsets = [0, 64], sizes = [8, 32], strides = [1, 1]} : vector<8x128xf32> to vector<8x32xf32>
      %86 = math.tanh %85 : vector<8x32xf32>
      %87 = vector.extract_strided_slice %72 {offsets = [0, 96], sizes = [8, 32], strides = [1, 1]} : vector<8x128xf32> to vector<8x32xf32>
      %88 = arith.negf %87 : vector<8x32xf32>
      %89 = math.exp %88 : vector<8x32xf32>
      %cst_67 = arith.constant 1.000000e+00 : f32
      %90 = vector.broadcast %cst_67 : f32 to vector<8x32xf32>
      %91 = arith.addf %90, %89 : vector<8x32xf32>
      %92 = arith.divf %90, %91 : vector<8x32xf32>
      %93 = arith.mulf %84, %arg19 : vector<8x32xf32>
      %94 = arith.mulf %78, %86 : vector<8x32xf32>
      %95 = arith.addf %93, %94 : vector<8x32xf32>
      %96 = math.tanh %95 : vector<8x32xf32>
      %97 = arith.mulf %92, %96 : vector<8x32xf32>
      %98 = arith.truncf %97 : vector<8x32xf32> to vector<8x32xbf16>
      %99 = arith.index_cast %64 : i32 to index
      %c0_68 = arith.constant 0 : index
      %c0_69 = arith.constant 0 : index
      %100 = vector.load %arg15[%99, %c0_68, %c0_69] : memref<8x8x32xbf16, #tpu.memory_space<vmem>>, vector<1x8x32xbf16>
      %101 = vector.shape_cast %100 : vector<1x8x32xbf16> to vector<8x32xbf16>
      %102 = vector.shape_cast %98 : vector<8x32xbf16> to vector<1x8x32xbf16>
      tpu.vector_store %arg15[%99, %c0_68, %c0_69], %102 {strides = array<i32>} : memref<8x8x32xbf16, #tpu.memory_space<vmem>>, vector<1x8x32xbf16>,
      %c4_i32_70 = arith.constant 4 : i32
      %103 = arith.muli %arg17, %c4_i32_70 : i32
      %c1_i32_71 = arith.constant 1 : i32
      %104 = arith.addi %103, %c1_i32_71 : i32
      %105 = arith.index_cast %104 : i32 to index
      %c0_72 = arith.constant 0 : index
      %c0_73 = arith.constant 0 : index
      %106 = vector.load %arg16[%105, %c0_72, %c0_73] : memref<8x8x128xbf16, #tpu.memory_space<vmem>>, vector<1x8x128xbf16>
      %107 = vector.shape_cast %106 : vector<1x8x128xbf16> to vector<8x128xbf16>
      %108 = arith.truncf %97 : vector<8x32xf32> to vector<8x32xbf16>
      %cst_74 = arith.constant dense<0.000000e+00> : vector<8x128xf32>
      %109 = tpu.matmul %108, %7, %cst_74 {dimension_numbers = #tpu.dot_dimension_numbers<[1], [0], [0], [1], [0, 0, 1, 1], [], []>} : vector<8x32xbf16>, vector<32x128xbf16>, vector<8x128xf32> -> vector<8x128xf32>
      %110 = arith.extf %107 : vector<8x128xbf16> to vector<8x128xf32>
      %111 = arith.addf %109, %110 : vector<8x128xf32>
      %112 = arith.addf %111, %10 : vector<8x128xf32>
      %113 = vector.extract_strided_slice %112 {offsets = [0, 0], sizes = [8, 32], strides = [1, 1]} : vector<8x128xf32> to vector<8x32xf32>
      %114 = arith.negf %113 : vector<8x32xf32>
      %115 = math.exp %114 : vector<8x32xf32>
      %cst_75 = arith.constant 1.000000e+00 : f32
      %116 = vector.broadcast %cst_75 : f32 to vector<8x32xf32>
      %117 = arith.addf %116, %115 : vector<8x32xf32>
      %118 = arith.divf %116, %117 : vector<8x32xf32>
      %119 = vector.extract_strided_slice %112 {offsets = [0, 32], sizes = [8, 32], strides = [1, 1]} : vector<8x128xf32> to vector<8x32xf32>
      %120 = arith.negf %119 : vector<8x32xf32>
      %121 = math.exp %120 : vector<8x32xf32>
      %cst_76 = arith.constant 1.000000e+00 : f32
      %122 = vector.broadcast %cst_76 : f32 to vector<8x32xf32>
      %123 = arith.addf %122, %121 : vector<8x32xf32>
      %124 = arith.divf %122, %123 : vector<8x32xf32>
      %125 = vector.extract_strided_slice %112 {offsets = [0, 64], sizes = [8, 32], strides = [1, 1]} : vector<8x128xf32> to vector<8x32xf32>
      %126 = math.tanh %125 : vector<8x32xf32>
      %127 = vector.extract_strided_slice %112 {offsets = [0, 96], sizes = [8, 32], strides = [1, 1]} : vector<8x128xf32> to vector<8x32xf32>
      %128 = arith.negf %127 : vector<8x32xf32>
      %129 = math.exp %128 : vector<8x32xf32>
      %cst_77 = arith.constant 1.000000e+00 : f32
      %130 = vector.broadcast %cst_77 : f32 to vector<8x32xf32>
      %131 = arith.addf %130, %129 : vector<8x32xf32>
      %132 = arith.divf %130, %131 : vector<8x32xf32>
      %133 = arith.mulf %124, %95 : vector<8x32xf32>
      %134 = arith.mulf %118, %126 : vector<8x32xf32>
      %135 = arith.addf %133, %134 : vector<8x32xf32>
      %136 = math.tanh %135 : vector<8x32xf32>
      %137 = arith.mulf %132, %136 : vector<8x32xf32>
      %138 = arith.truncf %137 : vector<8x32xf32> to vector<8x32xbf16>
      %139 = arith.index_cast %104 : i32 to index
      %c0_78 = arith.constant 0 : index
      %c0_79 = arith.constant 0 : index
      %140 = vector.load %arg15[%139, %c0_78, %c0_79] : memref<8x8x32xbf16, #tpu.memory_space<vmem>>, vector<1x8x32xbf16>
      %141 = vector.shape_cast %140 : vector<1x8x32xbf16> to vector<8x32xbf16>
      %142 = vector.shape_cast %138 : vector<8x32xbf16> to vector<1x8x32xbf16>
      tpu.vector_store %arg15[%139, %c0_78, %c0_79], %142 {strides = array<i32>} : memref<8x8x32xbf16, #tpu.memory_space<vmem>>, vector<1x8x32xbf16>,
      %c4_i32_80 = arith.constant 4 : i32
      %143 = arith.muli %arg17, %c4_i32_80 : i32
      %c2_i32_81 = arith.constant 2 : i32
      %144 = arith.addi %143, %c2_i32_81 : i32
      %145 = arith.index_cast %144 : i32 to index
      %c0_82 = arith.constant 0 : index
      %c0_83 = arith.constant 0 : index
      %146 = vector.load %arg16[%145, %c0_82, %c0_83] : memref<8x8x128xbf16, #tpu.memory_space<vmem>>, vector<1x8x128xbf16>
      %147 = vector.shape_cast %146 : vector<1x8x128xbf16> to vector<8x128xbf16>
      %148 = arith.truncf %137 : vector<8x32xf32> to vector<8x32xbf16>
      %cst_84 = arith.constant dense<0.000000e+00> : vector<8x128xf32>
      %149 = tpu.matmul %148, %7, %cst_84 {dimension_numbers = #tpu.dot_dimension_numbers<[1], [0], [0], [1], [0, 0, 1, 1], [], []>} : vector<8x32xbf16>, vector<32x128xbf16>, vector<8x128xf32> -> vector<8x128xf32>
      %150 = arith.extf %147 : vector<8x128xbf16> to vector<8x128xf32>
      %151 = arith.addf %149, %150 : vector<8x128xf32>
      %152 = arith.addf %151, %10 : vector<8x128xf32>
      %153 = vector.extract_strided_slice %152 {offsets = [0, 0], sizes = [8, 32], strides = [1, 1]} : vector<8x128xf32> to vector<8x32xf32>
      %154 = arith.negf %153 : vector<8x32xf32>
      %155 = math.exp %154 : vector<8x32xf32>
      %cst_85 = arith.constant 1.000000e+00 : f32
      %156 = vector.broadcast %cst_85 : f32 to vector<8x32xf32>
      %157 = arith.addf %156, %155 : vector<8x32xf32>
      %158 = arith.divf %156, %157 : vector<8x32xf32>
      %159 = vector.extract_strided_slice %152 {offsets = [0, 32], sizes = [8, 32], strides = [1, 1]} : vector<8x128xf32> to vector<8x32xf32>
      %160 = arith.negf %159 : vector<8x32xf32>
      %161 = math.exp %160 : vector<8x32xf32>
      %cst_86 = arith.constant 1.000000e+00 : f32
      %162 = vector.broadcast %cst_86 : f32 to vector<8x32xf32>
      %163 = arith.addf %162, %161 : vector<8x32xf32>
      %164 = arith.divf %162, %163 : vector<8x32xf32>
      %165 = vector.extract_strided_slice %152 {offsets = [0, 64], sizes = [8, 32], strides = [1, 1]} : vector<8x128xf32> to vector<8x32xf32>
      %166 = math.tanh %165 : vector<8x32xf32>
      %167 = vector.extract_strided_slice %152 {offsets = [0, 96], sizes = [8, 32], strides = [1, 1]} : vector<8x128xf32> to vector<8x32xf32>
      %168 = arith.negf %167 : vector<8x32xf32>
      %169 = math.exp %168 : vector<8x32xf32>
      %cst_87 = arith.constant 1.000000e+00 : f32
      %170 = vector.broadcast %cst_87 : f32 to vector<8x32xf32>
      %171 = arith.addf %170, %169 : vector<8x32xf32>
      %172 = arith.divf %170, %171 : vector<8x32xf32>
      %173 = arith.mulf %164, %135 : vector<8x32xf32>
      %174 = arith.mulf %158, %166 : vector<8x32xf32>
      %175 = arith.addf %173, %174 : vector<8x32xf32>
      %176 = math.tanh %175 : vector<8x32xf32>
      %177 = arith.mulf %172, %176 : vector<8x32xf32>
      %178 = arith.truncf %177 : vector<8x32xf32> to vector<8x32xbf16>
      %179 = arith.index_cast %144 : i32 to index
      %c0_88 = arith.constant 0 : index
      %c0_89 = arith.constant 0 : index
      %180 = vector.load %arg15[%179, %c0_88, %c0_89] : memref<8x8x32xbf16, #tpu.memory_space<vmem>>, vector<1x8x32xbf16>
      %181 = vector.shape_cast %180 : vector<1x8x32xbf16> to vector<8x32xbf16>
      %182 = vector.shape_cast %178 : vector<8x32xbf16> to vector<1x8x32xbf16>
      tpu.vector_store %arg15[%179, %c0_88, %c0_89], %182 {strides = array<i32>} : memref<8x8x32xbf16, #tpu.memory_space<vmem>>, vector<1x8x32xbf16>,
      %c4_i32_90 = arith.constant 4 : i32
      %183 = arith.muli %arg17, %c4_i32_90 : i32
      %c3_i32 = arith.constant 3 : i32
      %184 = arith.addi %183, %c3_i32 : i32
      %185 = arith.index_cast %184 : i32 to index
      %c0_91 = arith.constant 0 : index
      %c0_92 = arith.constant 0 : index
      %186 = vector.load %arg16[%185, %c0_91, %c0_92] : memref<8x8x128xbf16, #tpu.memory_space<vmem>>, vector<1x8x128xbf16>
      %187 = vector.shape_cast %186 : vector<1x8x128xbf16> to vector<8x128xbf16>
      %188 = arith.truncf %177 : vector<8x32xf32> to vector<8x32xbf16>
      %cst_93 = arith.constant dense<0.000000e+00> : vector<8x128xf32>
      %189 = tpu.matmul %188, %7, %cst_93 {dimension_numbers = #tpu.dot_dimension_numbers<[1], [0], [0], [1], [0, 0, 1, 1], [], []>} : vector<8x32xbf16>, vector<32x128xbf16>, vector<8x128xf32> -> vector<8x128xf32>
      %190 = arith.extf %187 : vector<8x128xbf16> to vector<8x128xf32>
      %191 = arith.addf %189, %190 : vector<8x128xf32>
      %192 = arith.addf %191, %10 : vector<8x128xf32>
      %193 = vector.extract_strided_slice %192 {offsets = [0, 0], sizes = [8, 32], strides = [1, 1]} : vector<8x128xf32> to vector<8x32xf32>
      %194 = arith.negf %193 : vector<8x32xf32>
      %195 = math.exp %194 : vector<8x32xf32>
      %cst_94 = arith.constant 1.000000e+00 : f32
      %196 = vector.broadcast %cst_94 : f32 to vector<8x32xf32>
      %197 = arith.addf %196, %195 : vector<8x32xf32>
      %198 = arith.divf %196, %197 : vector<8x32xf32>
      %199 = vector.extract_strided_slice %192 {offsets = [0, 32], sizes = [8, 32], strides = [1, 1]} : vector<8x128xf32> to vector<8x32xf32>
      %200 = arith.negf %199 : vector<8x32xf32>
      %201 = math.exp %200 : vector<8x32xf32>
      %cst_95 = arith.constant 1.000000e+00 : f32
      %202 = vector.broadcast %cst_95 : f32 to vector<8x32xf32>
      %203 = arith.addf %202, %201 : vector<8x32xf32>
      %204 = arith.divf %202, %203 : vector<8x32xf32>
      %205 = vector.extract_strided_slice %192 {offsets = [0, 64], sizes = [8, 32], strides = [1, 1]} : vector<8x128xf32> to vector<8x32xf32>
      %206 = math.tanh %205 : vector<8x32xf32>
      %207 = vector.extract_strided_slice %192 {offsets = [0, 96], sizes = [8, 32], strides = [1, 1]} : vector<8x128xf32> to vector<8x32xf32>
      %208 = arith.negf %207 : vector<8x32xf32>
      %209 = math.exp %208 : vector<8x32xf32>
      %cst_96 = arith.constant 1.000000e+00 : f32
      %210 = vector.broadcast %cst_96 : f32 to vector<8x32xf32>
      %211 = arith.addf %210, %209 : vector<8x32xf32>
      %212 = arith.divf %210, %211 : vector<8x32xf32>
      %213 = arith.mulf %204, %175 : vector<8x32xf32>
      %214 = arith.mulf %198, %206 : vector<8x32xf32>
      %215 = arith.addf %213, %214 : vector<8x32xf32>
      %216 = math.tanh %215 : vector<8x32xf32>
      %217 = arith.mulf %212, %216 : vector<8x32xf32>
      %218 = arith.truncf %217 : vector<8x32xf32> to vector<8x32xbf16>
      %219 = arith.index_cast %184 : i32 to index
      %c0_97 = arith.constant 0 : index
      %c0_98 = arith.constant 0 : index
      %220 = vector.load %arg15[%219, %c0_97, %c0_98] : memref<8x8x32xbf16, #tpu.memory_space<vmem>>, vector<1x8x32xbf16>
      %221 = vector.shape_cast %220 : vector<1x8x32xbf16> to vector<8x32xbf16>
      %222 = vector.shape_cast %218 : vector<8x32xbf16> to vector<1x8x32xbf16>
      tpu.vector_store %arg15[%219, %c0_97, %c0_98], %222 {strides = array<i32>} : memref<8x8x32xbf16, #tpu.memory_space<vmem>>, vector<1x8x32xbf16>,
      scf.yield %217, %215 : vector<8x32xf32>, vector<8x32xf32>
    }
    %c2_i32_17 = arith.constant 2 : i32
    %c0_18 = arith.constant 0 : index
    %c0_19 = arith.constant 0 : index
    %c0_20 = arith.constant 0 : index
    %17 = vector.load %arg13[%c0_18, %c0_19, %c0_20] : memref<2x8x32xf32, #tpu.memory_space<vmem>>, vector<1x8x32xf32>
    %18 = vector.shape_cast %17 : vector<1x8x32xf32> to vector<8x32xf32>
    %19 = vector.shape_cast %16#0 : vector<8x32xf32> to vector<1x8x32xf32>
    tpu.vector_store %arg13[%c0_18, %c0_19, %c0_20], %19 {strides = array<i32>} : memref<2x8x32xf32, #tpu.memory_space<vmem>>, vector<1x8x32xf32>,
    %c0_21 = arith.constant 0 : index
    %c0_22 = arith.constant 0 : index
    %c0_23 = arith.constant 0 : index
    %20 = vector.load %arg14[%c0_21, %c0_22, %c0_23] : memref<2x8x32xf32, #tpu.memory_space<vmem>>, vector<1x8x32xf32>
    %21 = vector.shape_cast %20 : vector<1x8x32xf32> to vector<8x32xf32>
    %22 = vector.shape_cast %16#1 : vector<8x32xf32> to vector<1x8x32xf32>
    tpu.vector_store %arg14[%c0_21, %c0_22, %c0_23], %22 {strides = array<i32>} : memref<2x8x32xf32, #tpu.memory_space<vmem>>, vector<1x8x32xf32>,
    %c0_24 = arith.constant 0 : index
    %c0_25 = arith.constant 0 : index
    %c0_26 = arith.constant 0 : index
    %23 = vector.load %arg15[%c0_24, %c0_25, %c0_26] : memref<8x8x32xbf16, #tpu.memory_space<vmem>>, vector<8x8x32xbf16>
    %24 = vector.shape_cast %23 : vector<8x8x32xbf16> to vector<64x32xbf16>
    %c0_27 = arith.constant 0 : index
    %c0_28 = arith.constant 0 : index
    %25 = vector.load %arg5[%c0_27, %c0_28] : memref<32x128xbf16, #tpu.memory_space<vmem>>, vector<32x128xbf16>
    %cst_29 = arith.constant dense<0.000000e+00> : vector<64x128xf32>
    %26 = tpu.matmul %24, %25, %cst_29 {dimension_numbers = #tpu.dot_dimension_numbers<[1], [0], [0], [1], [0, 0, 1, 1], [], []>} : vector<64x32xbf16>, vector<32x128xbf16>, vector<64x128xf32> -> vector<64x128xf32>
    %27 = vector.shape_cast %26 : vector<64x128xf32> to vector<8x8x128xf32>
    %28 = arith.truncf %27 : vector<8x8x128xf32> to vector<8x8x128xbf16>
    %c0_30 = arith.constant 0 : index
    %c0_31 = arith.constant 0 : index
    %c0_32 = arith.constant 0 : index
    %29 = vector.load %arg16[%c0_30, %c0_31, %c0_32] : memref<8x8x128xbf16, #tpu.memory_space<vmem>>, vector<8x8x128xbf16>
    tpu.vector_store %arg16[%c0_30, %c0_31, %c0_32], %28 {strides = array<i32>} : memref<8x8x128xbf16, #tpu.memory_space<vmem>>, vector<8x8x128xbf16>,
    %c0_33 = arith.constant 0 : index
    %c0_34 = arith.constant 0 : index
    %30 = vector.load %arg6[%c0_33, %c0_34] : memref<32x128xbf16, #tpu.memory_space<vmem>>, vector<32x128xbf16>
    %c0_35 = arith.constant 0 : index
    %c0_36 = arith.constant 0 : index
    %31 = vector.load %arg7[%c0_35, %c0_36] : memref<1x128xf32, #tpu.memory_space<vmem>>, vector<1x128xf32>
    %32 = vector.shape_cast %31 : vector<1x128xf32> to vector<1x128xf32>
    %33 = vector.broadcast %32 : vector<1x128xf32> to vector<8x128xf32>
    %c1 = arith.constant 1 : index
    %c0_37 = arith.constant 0 : index
    %c0_38 = arith.constant 0 : index
    %34 = vector.load %arg10[%c1, %c0_37, %c0_38] : memref<2x8x32xf32, #tpu.memory_space<vmem>>, vector<1x8x32xf32>
    %35 = vector.shape_cast %34 : vector<1x8x32xf32> to vector<8x32xf32>
    %c1_39 = arith.constant 1 : index
    %c0_40 = arith.constant 0 : index
    %c0_41 = arith.constant 0 : index
    %36 = vector.load %arg11[%c1_39, %c0_40, %c0_41] : memref<2x8x32xf32, #tpu.memory_space<vmem>>, vector<1x8x32xf32>
    %37 = vector.shape_cast %36 : vector<1x8x32xf32> to vector<8x32xf32>
    %c0_i32_42 = arith.constant 0 : i32
    %c2_i32_43 = arith.constant 2 : i32
    %38 = arith.addi %c0_i32_42, %c2_i32_43 : i32
    %c1_i32_44 = arith.constant 1 : i32
    %39:2 = scf.for %arg17 = %c0_i32_42 to %38 step %c1_i32_44 iter_args(%arg18 = %35, %arg19 = %37) -> (vector<8x32xf32>, vector<8x32xf32>)  : i32 {
      %c4_i32 = arith.constant 4 : i32
      %63 = arith.muli %arg17, %c4_i32 : i32
      %c0_i32_61 = arith.constant 0 : i32
      %64 = arith.addi %63, %c0_i32_61 : i32
      %65 = arith.index_cast %64 : i32 to index
      %c0_62 = arith.constant 0 : index
      %c0_63 = arith.constant 0 : index
      %66 = vector.load %arg16[%65, %c0_62, %c0_63] : memref<8x8x128xbf16, #tpu.memory_space<vmem>>, vector<1x8x128xbf16>
      %67 = vector.shape_cast %66 : vector<1x8x128xbf16> to vector<8x128xbf16>
      %68 = arith.truncf %arg18 : vector<8x32xf32> to vector<8x32xbf16>
      %cst_64 = arith.constant dense<0.000000e+00> : vector<8x128xf32>
      %69 = tpu.matmul %68, %30, %cst_64 {dimension_numbers = #tpu.dot_dimension_numbers<[1], [0], [0], [1], [0, 0, 1, 1], [], []>} : vector<8x32xbf16>, vector<32x128xbf16>, vector<8x128xf32> -> vector<8x128xf32>
      %70 = arith.extf %67 : vector<8x128xbf16> to vector<8x128xf32>
      %71 = arith.addf %69, %70 : vector<8x128xf32>
      %72 = arith.addf %71, %33 : vector<8x128xf32>
      %73 = vector.extract_strided_slice %72 {offsets = [0, 0], sizes = [8, 32], strides = [1, 1]} : vector<8x128xf32> to vector<8x32xf32>
      %74 = arith.negf %73 : vector<8x32xf32>
      %75 = math.exp %74 : vector<8x32xf32>
      %cst_65 = arith.constant 1.000000e+00 : f32
      %76 = vector.broadcast %cst_65 : f32 to vector<8x32xf32>
      %77 = arith.addf %76, %75 : vector<8x32xf32>
      %78 = arith.divf %76, %77 : vector<8x32xf32>
      %79 = vector.extract_strided_slice %72 {offsets = [0, 32], sizes = [8, 32], strides = [1, 1]} : vector<8x128xf32> to vector<8x32xf32>
      %80 = arith.negf %79 : vector<8x32xf32>
      %81 = math.exp %80 : vector<8x32xf32>
      %cst_66 = arith.constant 1.000000e+00 : f32
      %82 = vector.broadcast %cst_66 : f32 to vector<8x32xf32>
      %83 = arith.addf %82, %81 : vector<8x32xf32>
      %84 = arith.divf %82, %83 : vector<8x32xf32>
      %85 = vector.extract_strided_slice %72 {offsets = [0, 64], sizes = [8, 32], strides = [1, 1]} : vector<8x128xf32> to vector<8x32xf32>
      %86 = math.tanh %85 : vector<8x32xf32>
      %87 = vector.extract_strided_slice %72 {offsets = [0, 96], sizes = [8, 32], strides = [1, 1]} : vector<8x128xf32> to vector<8x32xf32>
      %88 = arith.negf %87 : vector<8x32xf32>
      %89 = math.exp %88 : vector<8x32xf32>
      %cst_67 = arith.constant 1.000000e+00 : f32
      %90 = vector.broadcast %cst_67 : f32 to vector<8x32xf32>
      %91 = arith.addf %90, %89 : vector<8x32xf32>
      %92 = arith.divf %90, %91 : vector<8x32xf32>
      %93 = arith.mulf %84, %arg19 : vector<8x32xf32>
      %94 = arith.mulf %78, %86 : vector<8x32xf32>
      %95 = arith.addf %93, %94 : vector<8x32xf32>
      %96 = math.tanh %95 : vector<8x32xf32>
      %97 = arith.mulf %92, %96 : vector<8x32xf32>
      %c4_i32_68 = arith.constant 4 : i32
      %98 = arith.muli %arg17, %c4_i32_68 : i32
      %c1_i32_69 = arith.constant 1 : i32
      %99 = arith.addi %98, %c1_i32_69 : i32
      %100 = arith.index_cast %99 : i32 to index
      %c0_70 = arith.constant 0 : index
      %c0_71 = arith.constant 0 : index
      %101 = vector.load %arg16[%100, %c0_70, %c0_71] : memref<8x8x128xbf16, #tpu.memory_space<vmem>>, vector<1x8x128xbf16>
      %102 = vector.shape_cast %101 : vector<1x8x128xbf16> to vector<8x128xbf16>
      %103 = arith.truncf %97 : vector<8x32xf32> to vector<8x32xbf16>
      %cst_72 = arith.constant dense<0.000000e+00> : vector<8x128xf32>
      %104 = tpu.matmul %103, %30, %cst_72 {dimension_numbers = #tpu.dot_dimension_numbers<[1], [0], [0], [1], [0, 0, 1, 1], [], []>} : vector<8x32xbf16>, vector<32x128xbf16>, vector<8x128xf32> -> vector<8x128xf32>
      %105 = arith.extf %102 : vector<8x128xbf16> to vector<8x128xf32>
      %106 = arith.addf %104, %105 : vector<8x128xf32>
      %107 = arith.addf %106, %33 : vector<8x128xf32>
      %108 = vector.extract_strided_slice %107 {offsets = [0, 0], sizes = [8, 32], strides = [1, 1]} : vector<8x128xf32> to vector<8x32xf32>
      %109 = arith.negf %108 : vector<8x32xf32>
      %110 = math.exp %109 : vector<8x32xf32>
      %cst_73 = arith.constant 1.000000e+00 : f32
      %111 = vector.broadcast %cst_73 : f32 to vector<8x32xf32>
      %112 = arith.addf %111, %110 : vector<8x32xf32>
      %113 = arith.divf %111, %112 : vector<8x32xf32>
      %114 = vector.extract_strided_slice %107 {offsets = [0, 32], sizes = [8, 32], strides = [1, 1]} : vector<8x128xf32> to vector<8x32xf32>
      %115 = arith.negf %114 : vector<8x32xf32>
      %116 = math.exp %115 : vector<8x32xf32>
      %cst_74 = arith.constant 1.000000e+00 : f32
      %117 = vector.broadcast %cst_74 : f32 to vector<8x32xf32>
      %118 = arith.addf %117, %116 : vector<8x32xf32>
      %119 = arith.divf %117, %118 : vector<8x32xf32>
      %120 = vector.extract_strided_slice %107 {offsets = [0, 64], sizes = [8, 32], strides = [1, 1]} : vector<8x128xf32> to vector<8x32xf32>
      %121 = math.tanh %120 : vector<8x32xf32>
      %122 = vector.extract_strided_slice %107 {offsets = [0, 96], sizes = [8, 32], strides = [1, 1]} : vector<8x128xf32> to vector<8x32xf32>
      %123 = arith.negf %122 : vector<8x32xf32>
      %124 = math.exp %123 : vector<8x32xf32>
      %cst_75 = arith.constant 1.000000e+00 : f32
      %125 = vector.broadcast %cst_75 : f32 to vector<8x32xf32>
      %126 = arith.addf %125, %124 : vector<8x32xf32>
      %127 = arith.divf %125, %126 : vector<8x32xf32>
      %128 = arith.mulf %119, %95 : vector<8x32xf32>
      %129 = arith.mulf %113, %121 : vector<8x32xf32>
      %130 = arith.addf %128, %129 : vector<8x32xf32>
      %131 = math.tanh %130 : vector<8x32xf32>
      %132 = arith.mulf %127, %131 : vector<8x32xf32>
      %c4_i32_76 = arith.constant 4 : i32
      %133 = arith.muli %arg17, %c4_i32_76 : i32
      %c2_i32_77 = arith.constant 2 : i32
      %134 = arith.addi %133, %c2_i32_77 : i32
      %135 = arith.index_cast %134 : i32 to index
      %c0_78 = arith.constant 0 : index
      %c0_79 = arith.constant 0 : index
      %136 = vector.load %arg16[%135, %c0_78, %c0_79] : memref<8x8x128xbf16, #tpu.memory_space<vmem>>, vector<1x8x128xbf16>
      %137 = vector.shape_cast %136 : vector<1x8x128xbf16> to vector<8x128xbf16>
      %138 = arith.truncf %132 : vector<8x32xf32> to vector<8x32xbf16>
      %cst_80 = arith.constant dense<0.000000e+00> : vector<8x128xf32>
      %139 = tpu.matmul %138, %30, %cst_80 {dimension_numbers = #tpu.dot_dimension_numbers<[1], [0], [0], [1], [0, 0, 1, 1], [], []>} : vector<8x32xbf16>, vector<32x128xbf16>, vector<8x128xf32> -> vector<8x128xf32>
      %140 = arith.extf %137 : vector<8x128xbf16> to vector<8x128xf32>
      %141 = arith.addf %139, %140 : vector<8x128xf32>
      %142 = arith.addf %141, %33 : vector<8x128xf32>
      %143 = vector.extract_strided_slice %142 {offsets = [0, 0], sizes = [8, 32], strides = [1, 1]} : vector<8x128xf32> to vector<8x32xf32>
      %144 = arith.negf %143 : vector<8x32xf32>
      %145 = math.exp %144 : vector<8x32xf32>
      %cst_81 = arith.constant 1.000000e+00 : f32
      %146 = vector.broadcast %cst_81 : f32 to vector<8x32xf32>
      %147 = arith.addf %146, %145 : vector<8x32xf32>
      %148 = arith.divf %146, %147 : vector<8x32xf32>
      %149 = vector.extract_strided_slice %142 {offsets = [0, 32], sizes = [8, 32], strides = [1, 1]} : vector<8x128xf32> to vector<8x32xf32>
      %150 = arith.negf %149 : vector<8x32xf32>
      %151 = math.exp %150 : vector<8x32xf32>
      %cst_82 = arith.constant 1.000000e+00 : f32
      %152 = vector.broadcast %cst_82 : f32 to vector<8x32xf32>
      %153 = arith.addf %152, %151 : vector<8x32xf32>
      %154 = arith.divf %152, %153 : vector<8x32xf32>
      %155 = vector.extract_strided_slice %142 {offsets = [0, 64], sizes = [8, 32], strides = [1, 1]} : vector<8x128xf32> to vector<8x32xf32>
      %156 = math.tanh %155 : vector<8x32xf32>
      %157 = vector.extract_strided_slice %142 {offsets = [0, 96], sizes = [8, 32], strides = [1, 1]} : vector<8x128xf32> to vector<8x32xf32>
      %158 = arith.negf %157 : vector<8x32xf32>
      %159 = math.exp %158 : vector<8x32xf32>
      %cst_83 = arith.constant 1.000000e+00 : f32
      %160 = vector.broadcast %cst_83 : f32 to vector<8x32xf32>
      %161 = arith.addf %160, %159 : vector<8x32xf32>
      %162 = arith.divf %160, %161 : vector<8x32xf32>
      %163 = arith.mulf %154, %130 : vector<8x32xf32>
      %164 = arith.mulf %148, %156 : vector<8x32xf32>
      %165 = arith.addf %163, %164 : vector<8x32xf32>
      %166 = math.tanh %165 : vector<8x32xf32>
      %167 = arith.mulf %162, %166 : vector<8x32xf32>
      %c4_i32_84 = arith.constant 4 : i32
      %168 = arith.muli %arg17, %c4_i32_84 : i32
      %c3_i32 = arith.constant 3 : i32
      %169 = arith.addi %168, %c3_i32 : i32
      %170 = arith.index_cast %169 : i32 to index
      %c0_85 = arith.constant 0 : index
      %c0_86 = arith.constant 0 : index
      %171 = vector.load %arg16[%170, %c0_85, %c0_86] : memref<8x8x128xbf16, #tpu.memory_space<vmem>>, vector<1x8x128xbf16>
      %172 = vector.shape_cast %171 : vector<1x8x128xbf16> to vector<8x128xbf16>
      %173 = arith.truncf %167 : vector<8x32xf32> to vector<8x32xbf16>
      %cst_87 = arith.constant dense<0.000000e+00> : vector<8x128xf32>
      %174 = tpu.matmul %173, %30, %cst_87 {dimension_numbers = #tpu.dot_dimension_numbers<[1], [0], [0], [1], [0, 0, 1, 1], [], []>} : vector<8x32xbf16>, vector<32x128xbf16>, vector<8x128xf32> -> vector<8x128xf32>
      %175 = arith.extf %172 : vector<8x128xbf16> to vector<8x128xf32>
      %176 = arith.addf %174, %175 : vector<8x128xf32>
      %177 = arith.addf %176, %33 : vector<8x128xf32>
      %178 = vector.extract_strided_slice %177 {offsets = [0, 0], sizes = [8, 32], strides = [1, 1]} : vector<8x128xf32> to vector<8x32xf32>
      %179 = arith.negf %178 : vector<8x32xf32>
      %180 = math.exp %179 : vector<8x32xf32>
      %cst_88 = arith.constant 1.000000e+00 : f32
      %181 = vector.broadcast %cst_88 : f32 to vector<8x32xf32>
      %182 = arith.addf %181, %180 : vector<8x32xf32>
      %183 = arith.divf %181, %182 : vector<8x32xf32>
      %184 = vector.extract_strided_slice %177 {offsets = [0, 32], sizes = [8, 32], strides = [1, 1]} : vector<8x128xf32> to vector<8x32xf32>
      %185 = arith.negf %184 : vector<8x32xf32>
      %186 = math.exp %185 : vector<8x32xf32>
      %cst_89 = arith.constant 1.000000e+00 : f32
      %187 = vector.broadcast %cst_89 : f32 to vector<8x32xf32>
      %188 = arith.addf %187, %186 : vector<8x32xf32>
      %189 = arith.divf %187, %188 : vector<8x32xf32>
      %190 = vector.extract_strided_slice %177 {offsets = [0, 64], sizes = [8, 32], strides = [1, 1]} : vector<8x128xf32> to vector<8x32xf32>
      %191 = math.tanh %190 : vector<8x32xf32>
      %192 = vector.extract_strided_slice %177 {offsets = [0, 96], sizes = [8, 32], strides = [1, 1]} : vector<8x128xf32> to vector<8x32xf32>
      %193 = arith.negf %192 : vector<8x32xf32>
      %194 = math.exp %193 : vector<8x32xf32>
      %cst_90 = arith.constant 1.000000e+00 : f32
      %195 = vector.broadcast %cst_90 : f32 to vector<8x32xf32>
      %196 = arith.addf %195, %194 : vector<8x32xf32>
      %197 = arith.divf %195, %196 : vector<8x32xf32>
      %198 = arith.mulf %189, %165 : vector<8x32xf32>
      %199 = arith.mulf %183, %191 : vector<8x32xf32>
      %200 = arith.addf %198, %199 : vector<8x32xf32>
      %201 = math.tanh %200 : vector<8x32xf32>
      %202 = arith.mulf %197, %201 : vector<8x32xf32>
      scf.yield %202, %200 : vector<8x32xf32>, vector<8x32xf32>
    }
    %c2_i32_45 = arith.constant 2 : i32
    %c1_46 = arith.constant 1 : index
    %c0_47 = arith.constant 0 : index
    %c0_48 = arith.constant 0 : index
    %40 = vector.load %arg13[%c1_46, %c0_47, %c0_48] : memref<2x8x32xf32, #tpu.memory_space<vmem>>, vector<1x8x32xf32>
    %41 = vector.shape_cast %40 : vector<1x8x32xf32> to vector<8x32xf32>
    %42 = vector.shape_cast %39#0 : vector<8x32xf32> to vector<1x8x32xf32>
    tpu.vector_store %arg13[%c1_46, %c0_47, %c0_48], %42 {strides = array<i32>} : memref<2x8x32xf32, #tpu.memory_space<vmem>>, vector<1x8x32xf32>,
    %c1_49 = arith.constant 1 : index
    %c0_50 = arith.constant 0 : index
    %c0_51 = arith.constant 0 : index
    %43 = vector.load %arg14[%c1_49, %c0_50, %c0_51] : memref<2x8x32xf32, #tpu.memory_space<vmem>>, vector<1x8x32xf32>
    %44 = vector.shape_cast %43 : vector<1x8x32xf32> to vector<8x32xf32>
    %45 = vector.shape_cast %39#1 : vector<8x32xf32> to vector<1x8x32xf32>
    tpu.vector_store %arg14[%c1_49, %c0_50, %c0_51], %45 {strides = array<i32>} : memref<2x8x32xf32, #tpu.memory_space<vmem>>, vector<1x8x32xf32>,
    %c0_52 = arith.constant 0 : index
    %c0_53 = arith.constant 0 : index
    %46 = vector.load %arg8[%c0_52, %c0_53] : memref<32x16xbf16, #tpu.memory_space<vmem>>, vector<32x16xbf16>
    %c0_54 = arith.constant 0 : index
    %c0_55 = arith.constant 0 : index
    %47 = vector.load %arg9[%c0_54, %c0_55] : memref<1x16xf32, #tpu.memory_space<vmem>>, vector<1x16xf32>
    %48 = arith.truncf %39#0 : vector<8x32xf32> to vector<8x32xbf16>
    %cst_56 = arith.constant dense<0.000000e+00> : vector<8x16xf32>
    %49 = tpu.matmul %48, %46, %cst_56 {dimension_numbers = #tpu.dot_dimension_numbers<[1], [0], [0], [1], [0, 0, 1, 1], [], []>} : vector<8x32xbf16>, vector<32x16xbf16>, vector<8x16xf32> -> vector<8x16xf32>
    %50 = vector.broadcast %47 : vector<1x16xf32> to vector<8x16xf32>
    %51 = arith.addf %49, %50 : vector<8x16xf32>
    %cst_57 = arith.constant dense<0xFF800000> : vector<8xf32>
    %52 = vector.multi_reduction <maximumf>, %51, %cst_57 [1] : vector<8x16xf32> to vector<8xf32>
    %53 = vector.shape_cast %52 : vector<8xf32> to vector<8x1xf32>
    %54 = vector.broadcast %53 : vector<8x1xf32> to vector<8x16xf32>
    %55 = arith.subf %51, %54 : vector<8x16xf32>
    %56 = math.exp %55 : vector<8x16xf32>
    %cst_58 = arith.constant dense<0.000000e+00> : vector<8xf32>
    %57 = vector.multi_reduction <add>, %56, %cst_58 [1] : vector<8x16xf32> to vector<8xf32>
    %58 = vector.shape_cast %57 : vector<8xf32> to vector<8x1xf32>
    %59 = math.log %58 : vector<8x1xf32>
    %60 = vector.broadcast %59 : vector<8x1xf32> to vector<8x16xf32>
    %61 = arith.subf %55, %60 : vector<8x16xf32>
    %c0_59 = arith.constant 0 : index
    %c0_60 = arith.constant 0 : index
    %62 = vector.load %arg12[%c0_59, %c0_60] : memref<8x16xf32, #tpu.memory_space<vmem>>, vector<8x16xf32>
    tpu.vector_store %arg12[%c0_59, %c0_60], %61 {strides = array<i32>} : memref<8x16xf32, #tpu.memory_space<vmem>>, vector<8x16xf32>,
    return
  }
  func.func @transform_0(%arg0: i32) -> (i32, i32, i32) {
    %c0_i32 = arith.constant 0 : i32
    %c0_i32_0 = arith.constant 0 : i32
    %c0_i32_1 = arith.constant 0 : i32
    return %c0_i32, %arg0, %c0_i32_0 : i32, i32, i32
  }
  func.func @transform_1(%arg0: i32) -> (i32, i32) {
    %c0_i32 = arith.constant 0 : i32
    %c0_i32_0 = arith.constant 0 : i32
    %c0_i32_1 = arith.constant 0 : i32
    return %c0_i32, %c0_i32_0 : i32, i32
  }
  func.func @transform_2(%arg0: i32) -> (i32, i32) {
    %c0_i32 = arith.constant 0 : i32
    %c0_i32_0 = arith.constant 0 : i32
    %c0_i32_1 = arith.constant 0 : i32
    return %c0_i32, %c0_i32_0 : i32, i32
  }
  func.func @transform_3(%arg0: i32) -> (i32, i32) {
    %c0_i32 = arith.constant 0 : i32
    %c0_i32_0 = arith.constant 0 : i32
    %c0_i32_1 = arith.constant 0 : i32
    return %c0_i32, %c0_i32_0 : i32, i32
  }
  func.func @transform_4(%arg0: i32) -> (i32, i32) {
    %c0_i32 = arith.constant 0 : i32
    %c0_i32_0 = arith.constant 0 : i32
    %c0_i32_1 = arith.constant 0 : i32
    return %c0_i32, %c0_i32_0 : i32, i32
  }
  func.func @transform_5(%arg0: i32) -> (i32, i32) {
    %c0_i32 = arith.constant 0 : i32
    %c0_i32_0 = arith.constant 0 : i32
    %c0_i32_1 = arith.constant 0 : i32
    return %c0_i32, %c0_i32_0 : i32, i32
  }
  func.func @transform_6(%arg0: i32) -> (i32, i32) {
    %c0_i32 = arith.constant 0 : i32
    %c0_i32_0 = arith.constant 0 : i32
    %c0_i32_1 = arith.constant 0 : i32
    return %c0_i32, %c0_i32_0 : i32, i32
  }
  func.func @transform_7(%arg0: i32) -> (i32, i32) {
    %c0_i32 = arith.constant 0 : i32
    %c0_i32_0 = arith.constant 0 : i32
    %c0_i32_1 = arith.constant 0 : i32
    return %c0_i32, %c0_i32_0 : i32, i32
  }
  func.func @transform_8(%arg0: i32) -> (i32, i32) {
    %c0_i32 = arith.constant 0 : i32
    %c0_i32_0 = arith.constant 0 : i32
    %c0_i32_1 = arith.constant 0 : i32
    return %c0_i32, %c0_i32_0 : i32, i32
  }
  func.func @transform_9(%arg0: i32) -> (i32, i32, i32) {
    %c0_i32 = arith.constant 0 : i32
    %c0_i32_0 = arith.constant 0 : i32
    %c0_i32_1 = arith.constant 0 : i32
    return %c0_i32, %arg0, %c0_i32_0 : i32, i32, i32
  }
  func.func @transform_10(%arg0: i32) -> (i32, i32, i32) {
    %c0_i32 = arith.constant 0 : i32
    %c0_i32_0 = arith.constant 0 : i32
    %c0_i32_1 = arith.constant 0 : i32
    return %c0_i32, %arg0, %c0_i32_0 : i32, i32, i32
  }
  func.func @transform_11(%arg0: i32) -> (i32, i32) {
    %c0_i32 = arith.constant 0 : i32
    %c0_i32_0 = arith.constant 0 : i32
    return %arg0, %c0_i32 : i32, i32
  }
  func.func @transform_12(%arg0: i32) -> (i32, i32, i32) {
    %c0_i32 = arith.constant 0 : i32
    %c0_i32_0 = arith.constant 0 : i32
    %c0_i32_1 = arith.constant 0 : i32
    return %c0_i32, %arg0, %c0_i32_0 : i32, i32, i32
  }
  func.func @transform_13(%arg0: i32) -> (i32, i32, i32) {
    %c0_i32 = arith.constant 0 : i32
    %c0_i32_0 = arith.constant 0 : i32
    %c0_i32_1 = arith.constant 0 : i32
    return %c0_i32, %arg0, %c0_i32_0 : i32, i32, i32
  }
}

</mosaic_0001>

<llo_original>
// kernel: lstm_forward_pallas.1
$region0: #{lstm_forward_pallas.1}
  #allocation0 [shape = 'u32[]', space=smem, size = 0x4, offset = 0x4, fixed_abs, tag = 'smem constant byte address 0x4 - core index']
  #allocation1 [shape = 'u32[144,128]{1,0:T(1,128)}', space=vmem, size = 0x12000, scoped, tag = 'internal scratch']
  #allocation2 [shape = 'bf16[8,8,32]{2,1,0:T(8,128)(2,1)}', space=vmem, size = 0x4000, scoped, tag = 'scratch operand']
  #allocation3 [shape = 'bf16[8,8,128]{2,1,0:T(8,128)(2,1)}', space=vmem, size = 0x4000, scoped, tag = 'scratch operand']
  %s0 = inlined_call_operand.vmem [shape: bf16[8,8,32], index: 0, kind: input, shape index: {}]
  %s1 = inlined_call_operand.vmem [shape: bf16[32,128], index: 1, kind: input, shape index: {}]
  %s2 = inlined_call_operand.vmem [shape: bf16[32,128], index: 2, kind: input, shape index: {}]
  %s3 = inlined_call_operand.vmem [shape: f32[1,128], index: 3, kind: input, shape index: {}]
  %s4 = inlined_call_operand.vmem [shape: bf16[32,128], index: 4, kind: input, shape index: {}]
  %s5 = inlined_call_operand.vmem [shape: bf16[32,128], index: 5, kind: input, shape index: {}]
  %s6 = inlined_call_operand.vmem [shape: f32[1,128], index: 6, kind: input, shape index: {}]
  %s7 = inlined_call_operand.vmem [shape: bf16[32,16], index: 7, kind: input, shape index: {}]
  %s8 = inlined_call_operand.vmem [shape: f32[1,16], index: 8, kind: input, shape index: {}]
  %s9 = inlined_call_operand.vmem [shape: f32[2,8,32], index: 9, kind: input, shape index: {}]
  %s10 = inlined_call_operand.vmem [shape: f32[2,8,32], index: 10, kind: input, shape index: {}]
  %s11 = inlined_call_operand.hbm [shape: f32[8,16], index: 11, kind: output, shape index: {0}]
  %s12 = inlined_call_operand.hbm [shape: f32[2,8,32], index: 12, kind: output, shape index: {1}]
  %s13 = inlined_call_operand.hbm [shape: f32[2,8,32], index: 13, kind: output, shape index: {2}]
  %14 = xla_tuple %s11, %s12, %s13
  %s15 = sld [smem:[#allocation0]]
  $region84: #{lstm_forward_pallas.1} parent=0
    _
  %s17 = ssub.s32 1, %s15
  %s18 = scalar_select 0, %s17, %s15
  $region1: #{lstm_forward_pallas.1} parent=0
    #allocation4 [shape = 'u8[4096]{0}', space=vmem, size = 0x1000, scoped, tag = 'output window, operand 0, single buffered']
    #allocation5 [shape = 's32[1]{0}', space=sflag, size = 0x4, scoped, tag = 'scoped memory for lstm_forward_pallas.1']
    #allocation6 [shape = 'u8[8192]{0}', space=vmem, size = 0x2000, scoped, tag = 'output window, operand 1, single buffered']
    #allocation7 [shape = 's32[1]{0}', space=sflag, size = 0x4, scoped, tag = 'scoped memory for lstm_forward_pallas.1']
    #allocation8 [shape = 'u8[8192]{0}', space=vmem, size = 0x2000, scoped, tag = 'output window, operand 2, single buffered']
    %19 = vsyncpa [#allocation5], 0
    %20 = vsyncpa [#allocation7], 0
    // Predicated region
    $region2: #{lstm_forward_pallas.1} parent=1 // pred_check
      _
    $region3: #{lstm_forward_pallas.1} parent=1 // pred_check_branch
      %22 = sbr.rel (0) target = $region5
    $region4: #{lstm_forward_pallas.1} parent=1 // pred_region
      _
    $region5: #{lstm_forward_pallas.1} parent=1 // pred_fallthru
      _
    // Predicated region
    $region6: #{lstm_forward_pallas.1} parent=1 // pred_check
      _
    $region7: #{lstm_forward_pallas.1} parent=1 // pred_check_branch
      %24 = sbr.rel (0) target = $region9
    $region8: #{lstm_forward_pallas.1} parent=1 // pred_region
      _
    $region9: #{lstm_forward_pallas.1} parent=1 // pred_fallthru
      _
    // Predicated region
    $region10: #{lstm_forward_pallas.1} parent=1 // pred_check
      _
    $region11: #{lstm_forward_pallas.1} parent=1 // pred_check_branch
      %26 = sbr.rel (0) target = $region13
    $region12: #{lstm_forward_pallas.1} parent=1 // pred_region
      _
    $region13: #{lstm_forward_pallas.1} parent=1 // pred_fallthru
      _
    // Predicated region
    $region14: #{lstm_forward_pallas.1} parent=1 // pred_check
      _
    $region15: #{lstm_forward_pallas.1} parent=1 // pred_check_branch
      %28 = sbr.rel (0) target = $region17
    $region16: #{lstm_forward_pallas.1} parent=1 // pred_region
      _
    $region17: #{lstm_forward_pallas.1} parent=1 // pred_fallthru
      _
    // Predicated region
    $region18: #{lstm_forward_pallas.1} parent=1 // pred_check
      _
    $region19: #{lstm_forward_pallas.1} parent=1 // pred_check_branch
      %30 = sbr.rel (0) target = $region21
    $region20: #{lstm_forward_pallas.1} parent=1 // pred_region
      _
    $region21: #{lstm_forward_pallas.1} parent=1 // pred_fallthru
      _
    // Predicated region
    $region22: #{lstm_forward_pallas.1} parent=1 // pred_check
      _
    $region23: #{lstm_forward_pallas.1} parent=1 // pred_check_branch
      %32 = sbr.rel (0) target = $region25
    $region24: #{lstm_forward_pallas.1} parent=1 // pred_region
      _
    $region25: #{lstm_forward_pallas.1} parent=1 // pred_fallthru
      _
    // Predicated region
    $region26: #{lstm_forward_pallas.1} parent=1 // pred_check
      _
    $region27: #{lstm_forward_pallas.1} parent=1 // pred_check_branch
      %34 = sbr.rel (0) target = $region29
    $region28: #{lstm_forward_pallas.1} parent=1 // pred_region
      _
    $region29: #{lstm_forward_pallas.1} parent=1 // pred_fallthru
      _
    // Predicated region
    $region30: #{lstm_forward_pallas.1} parent=1 // pred_check
      _
    $region31: #{lstm_forward_pallas.1} parent=1 // pred_check_branch
      %36 = sbr.rel (0) target = $region33
    $region32: #{lstm_forward_pallas.1} parent=1 // pred_region
      _
    $region33: #{lstm_forward_pallas.1} parent=1 // pred_fallthru
      _
    // Predicated region
    $region34: #{lstm_forward_pallas.1} parent=1 // pred_check
      _
    $region35: #{lstm_forward_pallas.1} parent=1 // pred_check_branch
      %38 = sbr.rel (0) target = $region37
    $region36: #{lstm_forward_pallas.1} parent=1 // pred_region
      _
    $region37: #{lstm_forward_pallas.1} parent=1 // pred_fallthru
      _
    // Predicated region
    $region38: #{lstm_forward_pallas.1} parent=1 // pred_check
      _
    $region39: #{lstm_forward_pallas.1} parent=1 // pred_check_branch
      %40 = sbr.rel (0) target = $region41
    $region40: #{lstm_forward_pallas.1} parent=1 // pred_region
      _
    $region41: #{lstm_forward_pallas.1} parent=1 // pred_fallthru
      _
    // Predicated region
    $region42: #{lstm_forward_pallas.1} parent=1 // pred_check
      _
    $region43: #{lstm_forward_pallas.1} parent=1 // pred_check_branch
      %42 = sbr.rel (0) target = $region45
    $region44: #{lstm_forward_pallas.1} parent=1 // pred_region
      _
    $region45: #{lstm_forward_pallas.1} parent=1 // pred_fallthru
      _
    %v44 = vld [vmem:[%s0] sm:$0xf]
    %v45 = vld [vmem:[%s0 + $0x4] sm:$0xf]
    %v46 = vld [vmem:[%s0 + $0x8] sm:$0xf]
    %v47 = vld [vmem:[%s0 + $0xc] sm:$0xf]
    %v48 = vld [vmem:[%s0 + $0x10] sm:$0xf]
    %v49 = vld [vmem:[%s0 + $0x14] sm:$0xf]
    %v50 = vld [vmem:[%s0 + $0x18] sm:$0xf]
    %v51 = vld [vmem:[%s0 + $0x1c] sm:$0xf]
    %v52 = vld [vmem:[%s1] sm:$0xf]
    %v53 = vld [vmem:[%s1 + $0x4] sm:$0xf]
    %v54 = vld [vmem:[%s1 + $0x8] sm:$0xf]
    %v55 = vld [vmem:[%s1 + $0xc] sm:$0xf]
    %v64 = vunpack.c.l.b16 %v44
    %v65 = vunpack.c.l.b16 %v45
    %v66 = vunpack.c.l.b16 %v46
    %v67 = vunpack.c.l.b16 %v47
    %v68 = vunpack.c.l.b16 %v48
    %v69 = vunpack.c.l.b16 %v49
    %v70 = vunpack.c.l.b16 %v50
    %v71 = vunpack.c.l.b16 %v51
    %v72 = vpack.c.b16 %v65, %v64
    %v73 = vpack.c.b16 %v67, %v66
    %v74 = vpack.c.b16 %v69, %v68
    %v75 = vpack.c.b16 %v71, %v70
    %v80 = vunpack.c.l.b16 %v52
    %v81 = vunpack.c.l.b16 %v53
    %v82 = vunpack.c.l.b16 %v54
    %v83 = vunpack.c.l.b16 %v55
    %v84 = vpack.c.b16 %v81, %v80
    %v85 = vpack.c.b16 %v83, %v82
    %vm88 = vcmask 261120
    %v90 = vsel %vm88, %v72, 0
    %v93 = vsel %vm88, %v73, 0
    %v96 = vsel %vm88, %v74, 0
    %v99 = vsel %vm88, %v75, 0
    %101 = vmatprep.subr.bf16.mxu0 0
    %102 = vmatpush1.bf16.msra.mxu0 %v84
    %103 = vmatprep.subr.bf16.mxu0 0
    %104 = vmatpush1.bf16.msra.mxu0 %v85
    %105 = vmatprep.subr.bf16.mxu0 0
    %106 = vmatpush1.bf16.msra.mxu0 0
    %107 = vmatprep.subr.bf16.mxu0 0
    %108 = vmatpush1.bf16.msra.mxu0 0
    %109 = vmatprep.subr.bf16.mxu0 0
    %110 = vmatpush1.bf16.msra.mxu0 0
    %111 = vmatprep.subr.bf16.mxu0 0
    %112 = vmatpush1.bf16.msra.mxu0 0
    %113 = vmatprep.subr.bf16.mxu0 0
    %114 = vmatpush1.bf16.msra.mxu0 0
    %115 = vmatprep.subr.bf16.mxu0 0
    %116 = vmatpush1.bf16.msra.mxu0 0
    %117 = vmatprep.subr.bf16.mxu0 0
    %118 = vmatpush1.bf16.msra.mxu0 0
    %119 = vmatprep.subr.bf16.mxu0 0
    %120 = vmatpush1.bf16.msra.mxu0 0
    %121 = vmatprep.subr.bf16.mxu0 0
    %122 = vmatpush1.bf16.msra.mxu0 0
    %123 = vmatprep.subr.bf16.mxu0 0
    %124 = vmatpush1.bf16.msra.mxu0 0
    %125 = vmatprep.subr.bf16.mxu0 0
    %126 = vmatpush1.bf16.msra.mxu0 0
    %127 = vmatprep.subr.bf16.mxu0 0
    %128 = vmatpush1.bf16.msra.mxu0 0
    %129 = vmatprep.subr.bf16.mxu0 0
    %130 = vmatpush1.bf16.msra.mxu0 0
    %131 = vmatprep.subr.bf16.mxu0 0
    %132 = vmatpush1.bf16.msra.mxu0 0
    %133 = vmatprep.mubr.bf16.mxu0 0
    %134 = vmatmul.mubr.bf16.gmra.mrb[0].mxu0 %v90
    %v135 = vpop.f32.mrb[0].mxu0
    %v136 = vadd.f32 0.0, %v135
    %v137 = vpop.f32.mrb[0].mxu0
    %v138 = vpop.f32.mrb[0].mxu0
    %v139 = vadd.f32 0.0, %v138
    %v140 = vpop.f32.mrb[0].mxu0
    %141 = vmatprep.mubr.bf16.mxu0 0
    %142 = vmatmul.mubr.bf16.gmra.mrb[0].mxu0 %v93
    %v143 = vpop.f32.mrb[0].mxu0
    %v144 = vadd.f32 0.0, %v143
    %v145 = vpop.f32.mrb[0].mxu0
    %v146 = vpop.f32.mrb[0].mxu0
    %v147 = vadd.f32 0.0, %v146
    %v148 = vpop.f32.mrb[0].mxu0
    %149 = vmatprep.mubr.bf16.mxu0 0
    %150 = vmatmul.mubr.bf16.gmra.mrb[0].mxu0 %v96
    %v151 = vpop.f32.mrb[0].mxu0
    %v152 = vadd.f32 0.0, %v151
    %v153 = vpop.f32.mrb[0].mxu0
    %v154 = vpop.f32.mrb[0].mxu0
    %v155 = vadd.f32 0.0, %v154
    %v156 = vpop.f32.mrb[0].mxu0
    %157 = vmatprep.mubr.bf16.mxu0 0
    %158 = vmatmul.mubr.bf16.gmra.mrb[0].mxu0 %v99
    %v159 = vpop.f32.mrb[0].mxu0
    %v160 = vadd.f32 0.0, %v159
    %v161 = vpop.f32.mrb[0].mxu0
    %v162 = vpop.f32.mrb[0].mxu0
    %v163 = vadd.f32 0.0, %v162
    %v164 = vpop.f32.mrb[0].mxu0
    %165 = vdwg.mxu0
    %v166 = vpack.c.bf16 %v136, %v136
    %v167 = vpack.c.bf16 %v139, %v139
    %v168 = vpack.c.bf16 %v144, %v144
    %v169 = vpack.c.bf16 %v147, %v147
    %v170 = vpack.c.bf16 %v152, %v152
    %v171 = vpack.c.bf16 %v155, %v155
    %v172 = vpack.c.bf16 %v160, %v160
    %v173 = vpack.c.bf16 %v163, %v163
    %174 = vst [vmem:[#allocation3] sm:$0xf] %v166
    %175 = vst [vmem:[#allocation3 + $0x4] sm:$0xf] %v167
    %176 = vst [vmem:[#allocation3 + $0x8] sm:$0xf] %v168
    %177 = vst [vmem:[#allocation3 + $0xc] sm:$0xf] %v169
    %178 = vst [vmem:[#allocation3 + $0x10] sm:$0xf] %v170
    %179 = vst [vmem:[#allocation3 + $0x14] sm:$0xf] %v171
    %180 = vst [vmem:[#allocation3 + $0x18] sm:$0xf] %v172
    %181 = vst [vmem:[#allocation3 + $0x1c] sm:$0xf] %v173
    %v182 = vld [vmem:[%s2] sm:$0xf]
    %v183 = vld [vmem:[%s2 + $0x4] sm:$0xf]
    %v184 = vld [vmem:[%s2 + $0x8] sm:$0xf]
    %v185 = vld [vmem:[%s2 + $0xc] sm:$0xf]
    %v186 = vld [vmem:[%s3] sm:$0x1]
    %v188 = vlaneseq
    %v189 = vshrl.u32 %v188, 7
    %v190 = vsub.s32 0, %v189
    %v191 = vrot.slane %v186, %v190
    %v193 = vld [vmem:[%s9] sm:$0xff]
    %v194 = vld [vmem:[%s10] sm:$0xff]
    loop: start=0, step=1, limit=2
    $region46: #{lstm_forward_pallas.1} parent=1 // loop_pre_header
      _
    $region47: #{lstm_forward_pallas.1} parent=1 // loop_header
      %s196 = sphi 0, %s200
      %p197 = scmp.ge.s32.totalorder %s196, 2
      %v201 = vphi %v193, %v561
      %v202 = vphi %v194, %v565
    $region48: #{lstm_forward_pallas.1} parent=1 // loop_header_branch
      %199 = sbr.rel (%p197) target = $region52
    $region49: #{lstm_forward_pallas.1} parent=1 // loop_body
      %s203 = smul.u32 %s196, 4
      %s204 = smul.addr %s203, 4
      %s205 = scalar_lea.vmem [#allocation3], %s204
      %v206 = vld [vmem:[%s205] sm:$0xf]
      %v207 = vpack.c.bf16 %v201, %v201
      %v208 = vunpack.c.l.bf16 %v206
      %v213 = vunpack.c.l.b16 %v182
      %v214 = vunpack.c.l.b16 %v183
      %v215 = vunpack.c.l.b16 %v184
      %v216 = vunpack.c.l.b16 %v185
      %v217 = vpack.c.b16 %v214, %v213
      %v218 = vpack.c.b16 %v216, %v215
      %v222 = vsel %vm88, %v207, 0
      %224 = vmatprep.subr.bf16.mxu0 0
      %225 = vmatpush1.bf16.msra.mxu0 %v217
      %226 = vmatprep.subr.bf16.mxu0 0
      %227 = vmatpush1.bf16.msra.mxu0 %v218
      %228 = vmatprep.subr.bf16.mxu0 0
      %229 = vmatpush1.bf16.msra.mxu0 0
      %230 = vmatprep.subr.bf16.mxu0 0
      %231 = vmatpush1.bf16.msra.mxu0 0
      %232 = vmatprep.subr.bf16.mxu0 0
      %233 = vmatpush1.bf16.msra.mxu0 0
      %234 = vmatprep.subr.bf16.mxu0 0
      %235 = vmatpush1.bf16.msra.mxu0 0
      %236 = vmatprep.subr.bf16.mxu0 0
      %237 = vmatpush1.bf16.msra.mxu0 0
      %238 = vmatprep.subr.bf16.mxu0 0
      %239 = vmatpush1.bf16.msra.mxu0 0
      %240 = vmatprep.subr.bf16.mxu0 0
      %241 = vmatpush1.bf16.msra.mxu0 0
      %242 = vmatprep.subr.bf16.mxu0 0
      %243 = vmatpush1.bf16.msra.mxu0 0
      %244 = vmatprep.subr.bf16.mxu0 0
      %245 = vmatpush1.bf16.msra.mxu0 0
      %246 = vmatprep.subr.bf16.mxu0 0
      %247 = vmatpush1.bf16.msra.mxu0 0
      %248 = vmatprep.subr.bf16.mxu0 0
      %249 = vmatpush1.bf16.msra.mxu0 0
      %250 = vmatprep.subr.bf16.mxu0 0
      %251 = vmatpush1.bf16.msra.mxu0 0
      %252 = vmatprep.subr.bf16.mxu0 0
      %253 = vmatpush1.bf16.msra.mxu0 0
      %254 = vmatprep.subr.bf16.mxu0 0
      %255 = vmatpush1.bf16.msra.mxu0 0
      %256 = vmatprep.mubr.bf16.mxu0 0
      %257 = vmatmul.mubr.bf16.gmra.mrb[0].mxu0 %v222
      %v258 = vpop.f32.mrb[0].mxu0
      %v259 = vadd.f32 %v208, %v258
      %v260 = vpop.f32.mrb[0].mxu0
      %v261 = vpop.f32.mrb[0].mxu0
      %v262 = vpop.f32.mrb[0].mxu0
      %263 = vdwg.mxu0
      %v264 = vadd.f32 %v259, %v191
      %v265 = vxor.u32 %v264, 2147483648
      %v266 = vmul.f32 %v265, 1.442695
      %v267 = vpow.pop %v266
      %v268 = vadd.f32 %v267, 1.0
      %v269 = vrcp.pop %v268
      %v270 = vmul.f32 1.0, %v269
      %v271 = vtanh.pop %v264
      %273 = vrot.lane.b32.xlu0 %v202, 32
      %v274 = vpop.permute.xlu0 %273
      %v276 = vmul.f32 %v270, %v274
      %278 = vrot.lane.b32.xlu0 %v271, 64
      %v279 = vpop.permute.xlu0 %278
      %v281 = vmul.f32 %v270, %v279
      %283 = vrot.lane.b32.xlu0 %v281, 32
      %v284 = vpop.permute.xlu0 %283
      %v286 = vadd.f32 %v276, %v284
      %v287 = vtanh.pop %v286
      %289 = vrot.lane.b32.xlu0 %v287, 64
      %v290 = vpop.permute.xlu0 %289
      %v292 = vmul.f32 %v270, %v290
      %v293 = vpack.c.bf16 %v292, %v292
      %v295 = vunpack.c.l.b16 %v293
      %v296 = vpack.c.b16 %v295, %v295
      %297 = vrot.lane.b32.xlu0 %v296, 32
      %v298 = vpop.permute.xlu0 %297
      %s300 = smul.addr %s203, 4
      %s301 = scalar_lea.vmem [#allocation2], %s300
      %vm302 = vcmask 257024
      %303 = vst.msk [vmem:[%s301] sm:$0xf] %vm302, %v298
      %s304 = sadd.s32 %s203, 1
      %s305 = smul.addr %s304, 4
      %s306 = scalar_lea.vmem [#allocation3], %s305
      %v307 = vld [vmem:[%s306] sm:$0xf]
      %v308 = vunpack.c.l.bf16 %v307
      %309 = vrot.lane.b32.xlu0 %v293, 32
      %v310 = vpop.permute.xlu0 %309
      %v312 = vsel %vm88, %v310, 0
      %314 = vmatprep.subr.bf16.mxu0 0
      %315 = vmatpush1.bf16.msra.mxu0 %v217
      %316 = vmatprep.subr.bf16.mxu0 0
      %317 = vmatpush1.bf16.msra.mxu0 %v218
      %318 = vmatprep.subr.bf16.mxu0 0
      %319 = vmatpush1.bf16.msra.mxu0 0
      %320 = vmatprep.subr.bf16.mxu0 0
      %321 = vmatpush1.bf16.msra.mxu0 0
      %322 = vmatprep.subr.bf16.mxu0 0
      %323 = vmatpush1.bf16.msra.mxu0 0
      %324 = vmatprep.subr.bf16.mxu0 0
      %325 = vmatpush1.bf16.msra.mxu0 0
      %326 = vmatprep.subr.bf16.mxu0 0
      %327 = vmatpush1.bf16.msra.mxu0 0
      %328 = vmatprep.subr.bf16.mxu0 0
      %329 = vmatpush1.bf16.msra.mxu0 0
      %330 = vmatprep.subr.bf16.mxu0 0
      %331 = vmatpush1.bf16.msra.mxu0 0
      %332 = vmatprep.subr.bf16.mxu0 0
      %333 = vmatpush1.bf16.msra.mxu0 0
      %334 = vmatprep.subr.bf16.mxu0 0
      %335 = vmatpush1.bf16.msra.mxu0 0
      %336 = vmatprep.subr.bf16.mxu0 0
      %337 = vmatpush1.bf16.msra.mxu0 0
      %338 = vmatprep.subr.bf16.mxu0 0
      %339 = vmatpush1.bf16.msra.mxu0 0
      %340 = vmatprep.subr.bf16.mxu0 0
      %341 = vmatpush1.bf16.msra.mxu0 0
      %342 = vmatprep.subr.bf16.mxu0 0
      %343 = vmatpush1.bf16.msra.mxu0 0
      %344 = vmatprep.subr.bf16.mxu0 0
      %345 = vmatpush1.bf16.msra.mxu0 0
      %346 = vmatprep.mubr.bf16.mxu0 0
      %347 = vmatmul.mubr.bf16.gmra.mrb[0].mxu0 %v312
      %v348 = vpop.f32.mrb[0].mxu0
      %v349 = vadd.f32 %v308, %v348
      %v350 = vpop.f32.mrb[0].mxu0
      %v351 = vpop.f32.mrb[0].mxu0
      %v352 = vpop.f32.mrb[0].mxu0
      %353 = vdwg.mxu0
      %v354 = vadd.f32 %v349, %v191
      %v355 = vxor.u32 %v354, 2147483648
      %v356 = vmul.f32 %v355, 1.442695
      %v357 = vpow.pop %v356
      %v358 = vadd.f32 %v357, 1.0
      %v359 = vrcp.pop %v358
      %v360 = vmul.f32 1.0, %v359
      %v361 = vtanh.pop %v354
      %v362 = vmul.f32 %v360, %v286
      %364 = vrot.lane.b32.xlu0 %v361, 64
      %v365 = vpop.permute.xlu0 %364
      %v367 = vmul.f32 %v360, %v365
      %369 = vrot.lane.b32.xlu0 %v367, 32
      %v370 = vpop.permute.xlu0 %369
      %v372 = vadd.f32 %v362, %v370
      %v373 = vtanh.pop %v372
      %375 = vrot.lane.b32.xlu0 %v373, 64
      %v376 = vpop.permute.xlu0 %375
      %v378 = vmul.f32 %v360, %v376
      %v379 = vpack.c.bf16 %v378, %v378
      %v381 = vunpack.c.l.b16 %v379
      %v382 = vpack.c.b16 %v381, %v381
      %383 = vrot.lane.b32.xlu0 %v382, 32
      %v384 = vpop.permute.xlu0 %383
      %s386 = smul.addr %s304, 4
      %s387 = scalar_lea.vmem [#allocation2], %s386
      %388 = vst.msk [vmem:[%s387] sm:$0xf] %vm302, %v384
      %s389 = sadd.s32 %s203, 2
      %s390 = smul.addr %s389, 4
      %s391 = scalar_lea.vmem [#allocation3], %s390
      %v392 = vld [vmem:[%s391] sm:$0xf]
      %v393 = vunpack.c.l.bf16 %v392
      %394 = vrot.lane.b32.xlu0 %v379, 32
      %v395 = vpop.permute.xlu0 %394
      %v397 = vsel %vm88, %v395, 0
      %399 = vmatprep.subr.bf16.mxu0 0
      %400 = vmatpush1.bf16.msra.mxu0 %v217
      %401 = vmatprep.subr.bf16.mxu0 0
      %402 = vmatpush1.bf16.msra.mxu0 %v218
      %403 = vmatprep.subr.bf16.mxu0 0
      %404 = vmatpush1.bf16.msra.mxu0 0
      %405 = vmatprep.subr.bf16.mxu0 0
      %406 = vmatpush1.bf16.msra.mxu0 0
      %407 = vmatprep.subr.bf16.mxu0 0
      %408 = vmatpush1.bf16.msra.mxu0 0
      %409 = vmatprep.subr.bf16.mxu0 0
      %410 = vmatpush1.bf16.msra.mxu0 0
      %411 = vmatprep.subr.bf16.mxu0 0
      %412 = vmatpush1.bf16.msra.mxu0 0
      %413 = vmatprep.subr.bf16.mxu0 0
      %414 = vmatpush1.bf16.msra.mxu0 0
      %415 = vmatprep.subr.bf16.mxu0 0
      %416 = vmatpush1.bf16.msra.mxu0 0
      %417 = vmatprep.subr.bf16.mxu0 0
      %418 = vmatpush1.bf16.msra.mxu0 0
      %419 = vmatprep.subr.bf16.mxu0 0
      %420 = vmatpush1.bf16.msra.mxu0 0
      %421 = vmatprep.subr.bf16.mxu0 0
      %422 = vmatpush1.bf16.msra.mxu0 0
      %423 = vmatprep.subr.bf16.mxu0 0
      %424 = vmatpush1.bf16.msra.mxu0 0
      %425 = vmatprep.subr.bf16.mxu0 0
      %426 = vmatpush1.bf16.msra.mxu0 0
      %427 = vmatprep.subr.bf16.mxu0 0
      %428 = vmatpush1.bf16.msra.mxu0 0
      %429 = vmatprep.subr.bf16.mxu0 0
      %430 = vmatpush1.bf16.msra.mxu0 0
      %431 = vmatprep.mubr.bf16.mxu0 0
      %432 = vmatmul.mubr.bf16.gmra.mrb[0].mxu0 %v397
      %v433 = vpop.f32.mrb[0].mxu0
      %v434 = vadd.f32 %v393, %v433
      %v435 = vpop.f32.mrb[0].mxu0
      %v436 = vpop.f32.mrb[0].mxu0
      %v437 = vpop.f32.mrb[0].mxu0
      %438 = vdwg.mxu0
      %v439 = vadd.f32 %v434, %v191
      %v440 = vxor.u32 %v439, 2147483648
      %v441 = vmul.f32 %v440, 1.442695
      %v442 = vpow.pop %v441
      %v443 = vadd.f32 %v442, 1.0
      %v444 = vrcp.pop %v443
      %v445 = vmul.f32 1.0, %v444
      %v446 = vtanh.pop %v439
      %v447 = vmul.f32 %v445, %v372
      %449 = vrot.lane.b32.xlu0 %v446, 64
      %v450 = vpop.permute.xlu0 %449
      %v452 = vmul.f32 %v445, %v450
      %454 = vrot.lane.b32.xlu0 %v452, 32
      %v455 = vpop.permute.xlu0 %454
      %v457 = vadd.f32 %v447, %v455
      %v458 = vtanh.pop %v457
      %460 = vrot.lane.b32.xlu0 %v458, 64
      %v461 = vpop.permute.xlu0 %460
      %v463 = vmul.f32 %v445, %v461
      %v464 = vpack.c.bf16 %v463, %v463
      %v466 = vunpack.c.l.b16 %v464
      %v467 = vpack.c.b16 %v466, %v466
      %468 = vrot.lane.b32.xlu0 %v467, 32
      %v469 = vpop.permute.xlu0 %468
      %s471 = smul.addr %s389, 4
      %s472 = scalar_lea.vmem [#allocation2], %s471
      %473 = vst.msk [vmem:[%s472] sm:$0xf] %vm302, %v469
      %s474 = sadd.s32 %s203, 3
      %s475 = smul.addr %s474, 4
      %s476 = scalar_lea.vmem [#allocation3], %s475
      %v477 = vld [vmem:[%s476] sm:$0xf]
      %v478 = vunpack.c.l.bf16 %v477
      %479 = vrot.lane.b32.xlu0 %v464, 32
      %v480 = vpop.permute.xlu0 %479
      %v482 = vsel %vm88, %v480, 0
      %484 = vmatprep.subr.bf16.mxu0 0
      %485 = vmatpush1.bf16.msra.mxu0 %v217
      %486 = vmatprep.subr.bf16.mxu0 0
      %487 = vmatpush1.bf16.msra.mxu0 %v218
      %488 = vmatprep.subr.bf16.mxu0 0
      %489 = vmatpush1.bf16.msra.mxu0 0
      %490 = vmatprep.subr.bf16.mxu0 0
      %491 = vmatpush1.bf16.msra.mxu0 0
      %492 = vmatprep.subr.bf16.mxu0 0
      %493 = vmatpush1.bf16.msra.mxu0 0
      %494 = vmatprep.subr.bf16.mxu0 0
      %495 = vmatpush1.bf16.msra.mxu0 0
      %496 = vmatprep.subr.bf16.mxu0 0
      %497 = vmatpush1.bf16.msra.mxu0 0
      %498 = vmatprep.subr.bf16.mxu0 0
      %499 = vmatpush1.bf16.msra.mxu0 0
      %500 = vmatprep.subr.bf16.mxu0 0
      %501 = vmatpush1.bf16.msra.mxu0 0
      %502 = vmatprep.subr.bf16.mxu0 0
      %503 = vmatpush1.bf16.msra.mxu0 0
      %504 = vmatprep.subr.bf16.mxu0 0
      %505 = vmatpush1.bf16.msra.mxu0 0
      %506 = vmatprep.subr.bf16.mxu0 0
      %507 = vmatpush1.bf16.msra.mxu0 0
      %508 = vmatprep.subr.bf16.mxu0 0
      %509 = vmatpush1.bf16.msra.mxu0 0
      %510 = vmatprep.subr.bf16.mxu0 0
      %511 = vmatpush1.bf16.msra.mxu0 0
      %512 = vmatprep.subr.bf16.mxu0 0
      %513 = vmatpush1.bf16.msra.mxu0 0
      %514 = vmatprep.subr.bf16.mxu0 0
      %515 = vmatpush1.bf16.msra.mxu0 0
      %516 = vmatprep.mubr.bf16.mxu0 0
      %517 = vmatmul.mubr.bf16.gmra.mrb[0].mxu0 %v482
      %v518 = vpop.f32.mrb[0].mxu0
      %v519 = vadd.f32 %v478, %v518
      %v520 = vpop.f32.mrb[0].mxu0
      %v521 = vpop.f32.mrb[0].mxu0
      %v522 = vpop.f32.mrb[0].mxu0
      %523 = vdwg.mxu0
      %v524 = vadd.f32 %v519, %v191
      %v525 = vxor.u32 %v524, 2147483648
      %v526 = vmul.f32 %v525, 1.442695
      %v527 = vpow.pop %v526
      %v528 = vadd.f32 %v527, 1.0
      %v529 = vrcp.pop %v528
      %v530 = vmul.f32 1.0, %v529
      %v531 = vtanh.pop %v524
      %v532 = vmul.f32 %v530, %v457
      %534 = vrot.lane.b32.xlu0 %v531, 64
      %v535 = vpop.permute.xlu0 %534
      %v537 = vmul.f32 %v530, %v535
      %539 = vrot.lane.b32.xlu0 %v537, 32
      %v540 = vpop.permute.xlu0 %539
      %v542 = vadd.f32 %v532, %v540
      %v543 = vtanh.pop %v542
      %545 = vrot.lane.b32.xlu0 %v543, 64
      %v546 = vpop.permute.xlu0 %545
      %v548 = vmul.f32 %v530, %v546
      %v549 = vpack.c.bf16 %v548, %v548
      %v551 = vunpack.c.l.b16 %v549
      %v552 = vpack.c.b16 %v551, %v551
      %553 = vrot.lane.b32.xlu0 %v552, 32
      %v554 = vpop.permute.xlu0 %553
      %s556 = smul.addr %s474, 4
      %s557 = scalar_lea.vmem [#allocation2], %s556
      %558 = vst.msk [vmem:[%s557] sm:$0xf] %vm302, %v554
      %560 = vrot.lane.b32.xlu0 %v548, 32
      %v561 = vpop.permute.xlu0 %560
      %564 = vrot.lane.b32.xlu0 %v542, 96
      %v565 = vpop.permute.xlu0 %564
    $region50: #{lstm_forward_pallas.1} parent=1 // loop_footer
      %s200 = sadd.s32 1, %s196
    $region51: #{lstm_forward_pallas.1} parent=1 // loop_footer_branch
      %195 = sbr.rel target = $region47
    $region52: #{lstm_forward_pallas.1} parent=1 // loop_exit
      _
    %567 = vst.msk [vmem:[#allocation6] sm:$0xff] %vm88, %v201
    %568 = vst.msk [vmem:[#allocation8] sm:$0xff] %vm88, %v202
    %v569 = vld [vmem:[#allocation2] sm:$0xf]
    %v570 = vld [vmem:[#allocation2 + $0x4] sm:$0xf]
    %v571 = vld [vmem:[#allocation2 + $0x8] sm:$0xf]
    %v572 = vld [vmem:[#allocation2 + $0xc] sm:$0xf]
    %v573 = vld [vmem:[#allocation2 + $0x10] sm:$0xf]
    %v574 = vld [vmem:[#allocation2 + $0x14] sm:$0xf]
    %v575 = vld [vmem:[#allocation2 + $0x18] sm:$0xf]
    %v576 = vld [vmem:[#allocation2 + $0x1c] sm:$0xf]
    %v577 = vld [vmem:[%s4] sm:$0xf]
    %v578 = vld [vmem:[%s4 + $0x4] sm:$0xf]
    %v579 = vld [vmem:[%s4 + $0x8] sm:$0xf]
    %v580 = vld [vmem:[%s4 + $0xc] sm:$0xf]
    %v589 = vunpack.c.l.b16 %v569
    %v590 = vunpack.c.l.b16 %v570
    %v591 = vunpack.c.l.b16 %v571
    %v592 = vunpack.c.l.b16 %v572
    %v593 = vunpack.c.l.b16 %v573
    %v594 = vunpack.c.l.b16 %v574
    %v595 = vunpack.c.l.b16 %v575
    %v596 = vunpack.c.l.b16 %v576
    %v597 = vpack.c.b16 %v590, %v589
    %v598 = vpack.c.b16 %v592, %v591
    %v599 = vpack.c.b16 %v594, %v593
    %v600 = vpack.c.b16 %v596, %v595
    %v605 = vunpack.c.l.b16 %v577
    %v606 = vunpack.c.l.b16 %v578
    %v607 = vunpack.c.l.b16 %v579
    %v608 = vunpack.c.l.b16 %v580
    %v609 = vpack.c.b16 %v606, %v605
    %v610 = vpack.c.b16 %v608, %v607
    %v614 = vsel %vm88, %v597, 0
    %v617 = vsel %vm88, %v598, 0
    %v620 = vsel %vm88, %v599, 0
    %v623 = vsel %vm88, %v600, 0
    %625 = vmatprep.subr.bf16.mxu0 0
    %626 = vmatpush1.bf16.msra.mxu0 %v609
    %627 = vmatprep.subr.bf16.mxu0 0
    %628 = vmatpush1.bf16.msra.mxu0 %v610
    %629 = vmatprep.subr.bf16.mxu0 0
    %630 = vmatpush1.bf16.msra.mxu0 0
    %631 = vmatprep.subr.bf16.mxu0 0
    %632 = vmatpush1.bf16.msra.mxu0 0
    %633 = vmatprep.subr.bf16.mxu0 0
    %634 = vmatpush1.bf16.msra.mxu0 0
    %635 = vmatprep.subr.bf16.mxu0 0
    %636 = vmatpush1.bf16.msra.mxu0 0
    %637 = vmatprep.subr.bf16.mxu0 0
    %638 = vmatpush1.bf16.msra.mxu0 0
    %639 = vmatprep.subr.bf16.mxu0 0
    %640 = vmatpush1.bf16.msra.mxu0 0
    %641 = vmatprep.subr.bf16.mxu0 0
    %642 = vmatpush1.bf16.msra.mxu0 0
    %643 = vmatprep.subr.bf16.mxu0 0
    %644 = vmatpush1.bf16.msra.mxu0 0
    %645 = vmatprep.subr.bf16.mxu0 0
    %646 = vmatpush1.bf16.msra.mxu0 0
    %647 = vmatprep.subr.bf16.mxu0 0
    %648 = vmatpush1.bf16.msra.mxu0 0
    %649 = vmatprep.subr.bf16.mxu0 0
    %650 = vmatpush1.bf16.msra.mxu0 0
    %651 = vmatprep.subr.bf16.mxu0 0
    %652 = vmatpush1.bf16.msra.mxu0 0
    %653 = vmatprep.subr.bf16.mxu0 0
    %654 = vmatpush1.bf16.msra.mxu0 0
    %655 = vmatprep.subr.bf16.mxu0 0
    %656 = vmatpush1.bf16.msra.mxu0 0
    %657 = vmatprep.mubr.bf16.mxu0 0
    %658 = vmatmul.mubr.bf16.gmra.mrb[0].mxu0 %v614
    %v659 = vpop.f32.mrb[0].mxu0
    %v660 = vadd.f32 0.0, %v659
    %v661 = vpop.f32.mrb[0].mxu0
    %v662 = vpop.f32.mrb[0].mxu0
    %v663 = vadd.f32 0.0, %v662
    %v664 = vpop.f32.mrb[0].mxu0
    %665 = vmatprep.mubr.bf16.mxu0 0
    %666 = vmatmul.mubr.bf16.gmra.mrb[0].mxu0 %v617
    %v667 = vpop.f32.mrb[0].mxu0
    %v668 = vadd.f32 0.0, %v667
    %v669 = vpop.f32.mrb[0].mxu0
    %v670 = vpop.f32.mrb[0].mxu0
    %v671 = vadd.f32 0.0, %v670
    %v672 = vpop.f32.mrb[0].mxu0
    %673 = vmatprep.mubr.bf16.mxu0 0
    %674 = vmatmul.mubr.bf16.gmra.mrb[0].mxu0 %v620
    %v675 = vpop.f32.mrb[0].mxu0
    %v676 = vadd.f32 0.0, %v675
    %v677 = vpop.f32.mrb[0].mxu0
    %v678 = vpop.f32.mrb[0].mxu0
    %v679 = vadd.f32 0.0, %v678
    %v680 = vpop.f32.mrb[0].mxu0
    %681 = vmatprep.mubr.bf16.mxu0 0
    %682 = vmatmul.mubr.bf16.gmra.mrb[0].mxu0 %v623
    %v683 = vpop.f32.mrb[0].mxu0
    %v684 = vadd.f32 0.0, %v683
    %v685 = vpop.f32.mrb[0].mxu0
    %v686 = vpop.f32.mrb[0].mxu0
    %v687 = vadd.f32 0.0, %v686
    %v688 = vpop.f32.mrb[0].mxu0
    %689 = vdwg.mxu0
    %v690 = vpack.c.bf16 %v660, %v660
    %v691 = vpack.c.bf16 %v663, %v663
    %v692 = vpack.c.bf16 %v668, %v668
    %v693 = vpack.c.bf16 %v671, %v671
    %v694 = vpack.c.bf16 %v676, %v676
    %v695 = vpack.c.bf16 %v679, %v679
    %v696 = vpack.c.bf16 %v684, %v684
    %v697 = vpack.c.bf16 %v687, %v687
    %698 = vst [vmem:[#allocation3] sm:$0xf] %v690
    %699 = vst [vmem:[#allocation3 + $0x4] sm:$0xf] %v691
    %700 = vst [vmem:[#allocation3 + $0x8] sm:$0xf] %v692
    %701 = vst [vmem:[#allocation3 + $0xc] sm:$0xf] %v693
    %702 = vst [vmem:[#allocation3 + $0x10] sm:$0xf] %v694
    %703 = vst [vmem:[#allocation3 + $0x14] sm:$0xf] %v695
    %704 = vst [vmem:[#allocation3 + $0x18] sm:$0xf] %v696
    %705 = vst [vmem:[#allocation3 + $0x1c] sm:$0xf] %v697
    %v706 = vld [vmem:[%s5] sm:$0xf]
    %v707 = vld [vmem:[%s5 + $0x4] sm:$0xf]
    %v708 = vld [vmem:[%s5 + $0x8] sm:$0xf]
    %v709 = vld [vmem:[%s5 + $0xc] sm:$0xf]
    %v710 = vld [vmem:[%s6] sm:$0x1]
    %v712 = vlaneseq
    %v713 = vshrl.u32 %v712, 7
    %v714 = vsub.s32 0, %v713
    %v715 = vrot.slane %v710, %v714
    %s717 = scalar_lea.vmem %s9, 8
    %v718 = vld [vmem:[%s717] sm:$0xff]
    %s719 = scalar_lea.vmem %s10, 8
    %v720 = vld [vmem:[%s719] sm:$0xff]
    loop: start=0, step=1, limit=2
    $region53: #{lstm_forward_pallas.1} parent=1 // loop_pre_header
      _
    $region54: #{lstm_forward_pallas.1} parent=1 // loop_header
      %s722 = sphi 0, %s726
      %p723 = scmp.ge.s32.totalorder %s722, 2
      %v727 = vphi %v718, %v1052
      %v728 = vphi %v720, %v1056
    $region55: #{lstm_forward_pallas.1} parent=1 // loop_header_branch
      %725 = sbr.rel (%p723) target = $region59
    $region56: #{lstm_forward_pallas.1} parent=1 // loop_body
      %s729 = smul.u32 %s722, 4
      %s730 = smul.addr %s729, 4
      %s731 = scalar_lea.vmem [#allocation3], %s730
      %v732 = vld [vmem:[%s731] sm:$0xf]
      %v733 = vpack.c.bf16 %v727, %v727
      %v734 = vunpack.c.l.bf16 %v732
      %v739 = vunpack.c.l.b16 %v706
      %v740 = vunpack.c.l.b16 %v707
      %v741 = vunpack.c.l.b16 %v708
      %v742 = vunpack.c.l.b16 %v709
      %v743 = vpack.c.b16 %v740, %v739
      %v744 = vpack.c.b16 %v742, %v741
      %v748 = vsel %vm88, %v733, 0
      %750 = vmatprep.subr.bf16.mxu0 0
      %751 = vmatpush1.bf16.msra.mxu0 %v743
      %752 = vmatprep.subr.bf16.mxu0 0
      %753 = vmatpush1.bf16.msra.mxu0 %v744
      %754 = vmatprep.subr.bf16.mxu0 0
      %755 = vmatpush1.bf16.msra.mxu0 0
      %756 = vmatprep.subr.bf16.mxu0 0
      %757 = vmatpush1.bf16.msra.mxu0 0
      %758 = vmatprep.subr.bf16.mxu0 0
      %759 = vmatpush1.bf16.msra.mxu0 0
      %760 = vmatprep.subr.bf16.mxu0 0
      %761 = vmatpush1.bf16.msra.mxu0 0
      %762 = vmatprep.subr.bf16.mxu0 0
      %763 = vmatpush1.bf16.msra.mxu0 0
      %764 = vmatprep.subr.bf16.mxu0 0
      %765 = vmatpush1.bf16.msra.mxu0 0
      %766 = vmatprep.subr.bf16.mxu0 0
      %767 = vmatpush1.bf16.msra.mxu0 0
      %768 = vmatprep.subr.bf16.mxu0 0
      %769 = vmatpush1.bf16.msra.mxu0 0
      %770 = vmatprep.subr.bf16.mxu0 0
      %771 = vmatpush1.bf16.msra.mxu0 0
      %772 = vmatprep.subr.bf16.mxu0 0
      %773 = vmatpush1.bf16.msra.mxu0 0
      %774 = vmatprep.subr.bf16.mxu0 0
      %775 = vmatpush1.bf16.msra.mxu0 0
      %776 = vmatprep.subr.bf16.mxu0 0
      %777 = vmatpush1.bf16.msra.mxu0 0
      %778 = vmatprep.subr.bf16.mxu0 0
      %779 = vmatpush1.bf16.msra.mxu0 0
      %780 = vmatprep.subr.bf16.mxu0 0
      %781 = vmatpush1.bf16.msra.mxu0 0
      %782 = vmatprep.mubr.bf16.mxu0 0
      %783 = vmatmul.mubr.bf16.gmra.mrb[0].mxu0 %v748
      %v784 = vpop.f32.mrb[0].mxu0
      %v785 = vadd.f32 %v734, %v784
      %v786 = vpop.f32.mrb[0].mxu0
      %v787 = vpop.f32.mrb[0].mxu0
      %v788 = vpop.f32.mrb[0].mxu0
      %789 = vdwg.mxu0
      %v790 = vadd.f32 %v785, %v715
      %v791 = vxor.u32 %v790, 2147483648
      %v792 = vmul.f32 %v791, 1.442695
      %v793 = vpow.pop %v792
      %v794 = vadd.f32 %v793, 1.0
      %v795 = vrcp.pop %v794
      %v796 = vmul.f32 1.0, %v795
      %v797 = vtanh.pop %v790
      %799 = vrot.lane.b32.xlu0 %v728, 32
      %v800 = vpop.permute.xlu0 %799
      %v802 = vmul.f32 %v796, %v800
      %804 = vrot.lane.b32.xlu0 %v797, 64
      %v805 = vpop.permute.xlu0 %804
      %v807 = vmul.f32 %v796, %v805
      %809 = vrot.lane.b32.xlu0 %v807, 32
      %v810 = vpop.permute.xlu0 %809
      %v812 = vadd.f32 %v802, %v810
      %v813 = vtanh.pop %v812
      %815 = vrot.lane.b32.xlu0 %v813, 64
      %v816 = vpop.permute.xlu0 %815
      %v818 = vmul.f32 %v796, %v816
      %s819 = sadd.s32 %s729, 1
      %s820 = smul.addr %s819, 4
      %s821 = scalar_lea.vmem [#allocation3], %s820
      %v822 = vld [vmem:[%s821] sm:$0xf]
      %v823 = vpack.c.bf16 %v818, %v818
      %v824 = vunpack.c.l.bf16 %v822
      %826 = vrot.lane.b32.xlu0 %v823, 32
      %v827 = vpop.permute.xlu0 %826
      %v829 = vsel %vm88, %v827, 0
      %831 = vmatprep.subr.bf16.mxu0 0
      %832 = vmatpush1.bf16.msra.mxu0 %v743
      %833 = vmatprep.subr.bf16.mxu0 0
      %834 = vmatpush1.bf16.msra.mxu0 %v744
      %835 = vmatprep.subr.bf16.mxu0 0
      %836 = vmatpush1.bf16.msra.mxu0 0
      %837 = vmatprep.subr.bf16.mxu0 0
      %838 = vmatpush1.bf16.msra.mxu0 0
      %839 = vmatprep.subr.bf16.mxu0 0
      %840 = vmatpush1.bf16.msra.mxu0 0
      %841 = vmatprep.subr.bf16.mxu0 0
      %842 = vmatpush1.bf16.msra.mxu0 0
      %843 = vmatprep.subr.bf16.mxu0 0
      %844 = vmatpush1.bf16.msra.mxu0 0
      %845 = vmatprep.subr.bf16.mxu0 0
      %846 = vmatpush1.bf16.msra.mxu0 0
      %847 = vmatprep.subr.bf16.mxu0 0
      %848 = vmatpush1.bf16.msra.mxu0 0
      %849 = vmatprep.subr.bf16.mxu0 0
      %850 = vmatpush1.bf16.msra.mxu0 0
      %851 = vmatprep.subr.bf16.mxu0 0
      %852 = vmatpush1.bf16.msra.mxu0 0
      %853 = vmatprep.subr.bf16.mxu0 0
      %854 = vmatpush1.bf16.msra.mxu0 0
      %855 = vmatprep.subr.bf16.mxu0 0
      %856 = vmatpush1.bf16.msra.mxu0 0
      %857 = vmatprep.subr.bf16.mxu0 0
      %858 = vmatpush1.bf16.msra.mxu0 0
      %859 = vmatprep.subr.bf16.mxu0 0
      %860 = vmatpush1.bf16.msra.mxu0 0
      %861 = vmatprep.subr.bf16.mxu0 0
      %862 = vmatpush1.bf16.msra.mxu0 0
      %863 = vmatprep.mubr.bf16.mxu0 0
      %864 = vmatmul.mubr.bf16.gmra.mrb[0].mxu0 %v829
      %v865 = vpop.f32.mrb[0].mxu0
      %v866 = vadd.f32 %v824, %v865
      %v867 = vpop.f32.mrb[0].mxu0
      %v868 = vpop.f32.mrb[0].mxu0
      %v869 = vpop.f32.mrb[0].mxu0
      %870 = vdwg.mxu0
      %v871 = vadd.f32 %v866, %v715
      %v872 = vxor.u32 %v871, 2147483648
      %v873 = vmul.f32 %v872, 1.442695
      %v874 = vpow.pop %v873
      %v875 = vadd.f32 %v874, 1.0
      %v876 = vrcp.pop %v875
      %v877 = vmul.f32 1.0, %v876
      %v878 = vtanh.pop %v871
      %v879 = vmul.f32 %v877, %v812
      %881 = vrot.lane.b32.xlu0 %v878, 64
      %v882 = vpop.permute.xlu0 %881
      %v884 = vmul.f32 %v877, %v882
      %886 = vrot.lane.b32.xlu0 %v884, 32
      %v887 = vpop.permute.xlu0 %886
      %v889 = vadd.f32 %v879, %v887
      %v890 = vtanh.pop %v889
      %892 = vrot.lane.b32.xlu0 %v890, 64
      %v893 = vpop.permute.xlu0 %892
      %v895 = vmul.f32 %v877, %v893
      %s896 = sadd.s32 %s729, 2
      %s897 = smul.addr %s896, 4
      %s898 = scalar_lea.vmem [#allocation3], %s897
      %v899 = vld [vmem:[%s898] sm:$0xf]
      %v900 = vpack.c.bf16 %v895, %v895
      %v901 = vunpack.c.l.bf16 %v899
      %903 = vrot.lane.b32.xlu0 %v900, 32
      %v904 = vpop.permute.xlu0 %903
      %v906 = vsel %vm88, %v904, 0
      %908 = vmatprep.subr.bf16.mxu0 0
      %909 = vmatpush1.bf16.msra.mxu0 %v743
      %910 = vmatprep.subr.bf16.mxu0 0
      %911 = vmatpush1.bf16.msra.mxu0 %v744
      %912 = vmatprep.subr.bf16.mxu0 0
      %913 = vmatpush1.bf16.msra.mxu0 0
      %914 = vmatprep.subr.bf16.mxu0 0
      %915 = vmatpush1.bf16.msra.mxu0 0
      %916 = vmatprep.subr.bf16.mxu0 0
      %917 = vmatpush1.bf16.msra.mxu0 0
      %918 = vmatprep.subr.bf16.mxu0 0
      %919 = vmatpush1.bf16.msra.mxu0 0
      %920 = vmatprep.subr.bf16.mxu0 0
      %921 = vmatpush1.bf16.msra.mxu0 0
      %922 = vmatprep.subr.bf16.mxu0 0
      %923 = vmatpush1.bf16.msra.mxu0 0
      %924 = vmatprep.subr.bf16.mxu0 0
      %925 = vmatpush1.bf16.msra.mxu0 0
      %926 = vmatprep.subr.bf16.mxu0 0
      %927 = vmatpush1.bf16.msra.mxu0 0
      %928 = vmatprep.subr.bf16.mxu0 0
      %929 = vmatpush1.bf16.msra.mxu0 0
      %930 = vmatprep.subr.bf16.mxu0 0
      %931 = vmatpush1.bf16.msra.mxu0 0
      %932 = vmatprep.subr.bf16.mxu0 0
      %933 = vmatpush1.bf16.msra.mxu0 0
      %934 = vmatprep.subr.bf16.mxu0 0
      %935 = vmatpush1.bf16.msra.mxu0 0
      %936 = vmatprep.subr.bf16.mxu0 0
      %937 = vmatpush1.bf16.msra.mxu0 0
      %938 = vmatprep.subr.bf16.mxu0 0
      %939 = vmatpush1.bf16.msra.mxu0 0
      %940 = vmatprep.mubr.bf16.mxu0 0
      %941 = vmatmul.mubr.bf16.gmra.mrb[0].mxu0 %v906
      %v942 = vpop.f32.mrb[0].mxu0
      %v943 = vadd.f32 %v901, %v942
      %v944 = vpop.f32.mrb[0].mxu0
      %v945 = vpop.f32.mrb[0].mxu0
      %v946 = vpop.f32.mrb[0].mxu0
      %947 = vdwg.mxu0
      %v948 = vadd.f32 %v943, %v715
      %v949 = vxor.u32 %v948, 2147483648
      %v950 = vmul.f32 %v949, 1.442695
      %v951 = vpow.pop %v950
      %v952 = vadd.f32 %v951, 1.0
      %v953 = vrcp.pop %v952
      %v954 = vmul.f32 1.0, %v953
      %v955 = vtanh.pop %v948
      %v956 = vmul.f32 %v954, %v889
      %958 = vrot.lane.b32.xlu0 %v955, 64
      %v959 = vpop.permute.xlu0 %958
      %v961 = vmul.f32 %v954, %v959
      %963 = vrot.lane.b32.xlu0 %v961, 32
      %v964 = vpop.permute.xlu0 %963
      %v966 = vadd.f32 %v956, %v964
      %v967 = vtanh.pop %v966
      %969 = vrot.lane.b32.xlu0 %v967, 64
      %v970 = vpop.permute.xlu0 %969
      %v972 = vmul.f32 %v954, %v970
      %s973 = sadd.s32 %s729, 3
      %s974 = smul.addr %s973, 4
      %s975 = scalar_lea.vmem [#allocation3], %s974
      %v976 = vld [vmem:[%s975] sm:$0xf]
      %v977 = vpack.c.bf16 %v972, %v972
      %v978 = vunpack.c.l.bf16 %v976
      %980 = vrot.lane.b32.xlu0 %v977, 32
      %v981 = vpop.permute.xlu0 %980
      %v983 = vsel %vm88, %v981, 0
      %985 = vmatprep.subr.bf16.mxu0 0
      %986 = vmatpush1.bf16.msra.mxu0 %v743
      %987 = vmatprep.subr.bf16.mxu0 0
      %988 = vmatpush1.bf16.msra.mxu0 %v744
      %989 = vmatprep.subr.bf16.mxu0 0
      %990 = vmatpush1.bf16.msra.mxu0 0
      %991 = vmatprep.subr.bf16.mxu0 0
      %992 = vmatpush1.bf16.msra.mxu0 0
      %993 = vmatprep.subr.bf16.mxu0 0
      %994 = vmatpush1.bf16.msra.mxu0 0
      %995 = vmatprep.subr.bf16.mxu0 0
      %996 = vmatpush1.bf16.msra.mxu0 0
      %997 = vmatprep.subr.bf16.mxu0 0
      %998 = vmatpush1.bf16.msra.mxu0 0
      %999 = vmatprep.subr.bf16.mxu0 0
      %1000 = vmatpush1.bf16.msra.mxu0 0
      %1001 = vmatprep.subr.bf16.mxu0 0
      %1002 = vmatpush1.bf16.msra.mxu0 0
      %1003 = vmatprep.subr.bf16.mxu0 0
      %1004 = vmatpush1.bf16.msra.mxu0 0
      %1005 = vmatprep.subr.bf16.mxu0 0
      %1006 = vmatpush1.bf16.msra.mxu0 0
      %1007 = vmatprep.subr.bf16.mxu0 0
      %1008 = vmatpush1.bf16.msra.mxu0 0
      %1009 = vmatprep.subr.bf16.mxu0 0
      %1010 = vmatpush1.bf16.msra.mxu0 0
      %1011 = vmatprep.subr.bf16.mxu0 0
      %1012 = vmatpush1.bf16.msra.mxu0 0
      %1013 = vmatprep.subr.bf16.mxu0 0
      %1014 = vmatpush1.bf16.msra.mxu0 0
      %1015 = vmatprep.subr.bf16.mxu0 0
      %1016 = vmatpush1.bf16.msra.mxu0 0
      %1017 = vmatprep.mubr.bf16.mxu0 0
      %1018 = vmatmul.mubr.bf16.gmra.mrb[0].mxu0 %v983
      %v1019 = vpop.f32.mrb[0].mxu0
      %v1020 = vadd.f32 %v978, %v1019
      %v1021 = vpop.f32.mrb[0].mxu0
      %v1022 = vpop.f32.mrb[0].mxu0
      %v1023 = vpop.f32.mrb[0].mxu0
      %1024 = vdwg.mxu0
      %v1025 = vadd.f32 %v1020, %v715
      %v1026 = vxor.u32 %v1025, 2147483648
      %v1027 = vmul.f32 %v1026, 1.442695
      %v1028 = vpow.pop %v1027
      %v1029 = vadd.f32 %v1028, 1.0
      %v1030 = vrcp.pop %v1029
      %v1031 = vmul.f32 1.0, %v1030
      %v1032 = vtanh.pop %v1025
      %v1033 = vmul.f32 %v1031, %v966
      %1035 = vrot.lane.b32.xlu0 %v1032, 64
      %v1036 = vpop.permute.xlu0 %1035
      %v1038 = vmul.f32 %v1031, %v1036
      %1040 = vrot.lane.b32.xlu0 %v1038, 32
      %v1041 = vpop.permute.xlu0 %1040
      %v1043 = vadd.f32 %v1033, %v1041
      %v1044 = vtanh.pop %v1043
      %1046 = vrot.lane.b32.xlu0 %v1044, 64
      %v1047 = vpop.permute.xlu0 %1046
      %v1049 = vmul.f32 %v1031, %v1047
      %1051 = vrot.lane.b32.xlu0 %v1049, 32
      %v1052 = vpop.permute.xlu0 %1051
      %1055 = vrot.lane.b32.xlu0 %v1043, 96
      %v1056 = vpop.permute.xlu0 %1055
    $region57: #{lstm_forward_pallas.1} parent=1 // loop_footer
      %s726 = sadd.s32 1, %s722
    $region58: #{lstm_forward_pallas.1} parent=1 // loop_footer_branch
      %721 = sbr.rel target = $region54
    $region59: #{lstm_forward_pallas.1} parent=1 // loop_exit
      _
    %s1058 = scalar_lea.vmem [#allocation6], 8
    %1059 = vst.msk [vmem:[%s1058] sm:$0xff] %vm88, %v727
    %s1060 = scalar_lea.vmem [#allocation8], 8
    %1061 = vst.msk [vmem:[%s1060] sm:$0xff] %vm88, %v728
    %v1062 = vld [vmem:[%s7] sm:$0xf]
    %v1063 = vld [vmem:[%s7 + $0x4] sm:$0xf]
    %v1064 = vld [vmem:[%s7 + $0x8] sm:$0xf]
    %v1065 = vld [vmem:[%s7 + $0xc] sm:$0xf]
    %v1066 = vld [vmem:[%s8] sm:$0x1]
    %v1067 = vpack.c.bf16 %v727, %v727
    %v1069 = vlaneseq
    %v1070 = vshrl.u32 %v1069, 7
    %v1071 = vsub.s32 0, %v1070
    %v1072 = vrot.slane %v1066, %v1071
    %v1078 = vunpack.c.l.b16 %v1062
    %v1079 = vunpack.c.l.b16 %v1063
    %v1080 = vunpack.c.l.b16 %v1064
    %v1081 = vunpack.c.l.b16 %v1065
    %v1082 = vpack.c.b16 %v1079, %v1078
    %v1083 = vpack.c.b16 %v1081, %v1080
    %v1087 = vsel %vm88, %v1067, 0
    %1089 = vmatprep.subr.bf16.mxu0 0
    %1090 = vmatpush1.bf16.msra.mxu0 %v1082
    %1091 = vmatprep.subr.bf16.mxu0 0
    %1092 = vmatpush1.bf16.msra.mxu0 %v1083
    %1093 = vmatprep.subr.bf16.mxu0 0
    %1094 = vmatpush1.bf16.msra.mxu0 0
    %1095 = vmatprep.subr.bf16.mxu0 0
    %1096 = vmatpush1.bf16.msra.mxu0 0
    %1097 = vmatprep.subr.bf16.mxu0 0
    %1098 = vmatpush1.bf16.msra.mxu0 0
    %1099 = vmatprep.subr.bf16.mxu0 0
    %1100 = vmatpush1.bf16.msra.mxu0 0
    %1101 = vmatprep.subr.bf16.mxu0 0
    %1102 = vmatpush1.bf16.msra.mxu0 0
    %1103 = vmatprep.subr.bf16.mxu0 0
    %1104 = vmatpush1.bf16.msra.mxu0 0
    %1105 = vmatprep.subr.bf16.mxu0 0
    %1106 = vmatpush1.bf16.msra.mxu0 0
    %1107 = vmatprep.subr.bf16.mxu0 0
    %1108 = vmatpush1.bf16.msra.mxu0 0
    %1109 = vmatprep.subr.bf16.mxu0 0
    %1110 = vmatpush1.bf16.msra.mxu0 0
    %1111 = vmatprep.subr.bf16.mxu0 0
    %1112 = vmatpush1.bf16.msra.mxu0 0
    %1113 = vmatprep.subr.bf16.mxu0 0
    %1114 = vmatpush1.bf16.msra.mxu0 0
    %1115 = vmatprep.subr.bf16.mxu0 0
    %1116 = vmatpush1.bf16.msra.mxu0 0
    %1117 = vmatprep.subr.bf16.mxu0 0
    %1118 = vmatpush1.bf16.msra.mxu0 0
    %1119 = vmatprep.subr.bf16.mxu0 0
    %1120 = vmatpush1.bf16.msra.mxu0 0
    %1121 = vmatprep.mubr.bf16.mxu0 0
    %1122 = vmatmul.mubr.bf16.gmra.mrb[0].mxu0 %v1087
    %v1123 = vpop.f32.mrb[0].mxu0
    %v1124 = vadd.f32 %v1072, %v1123
    %v1125 = vpop.f32.mrb[0].mxu0
    %v1126 = vpop.f32.mrb[0].mxu0
    %v1127 = vpop.f32.mrb[0].mxu0
    %1128 = vdwg.mxu0
    %vm1129 = vcmask 130048
    %v1130 = vsel %vm1129, %v1124, -inf
    %1131 = vmax.xlane.f32.xlu0 %v1130
    %v1132 = vpop.xlane.xlu0 %1131
    %v1133 = vsub.f32 %v1124, %v1132
    %v1134 = vmul.f32 %v1133, 1.442695
    %v1135 = vpow.pop %v1134
    %v1136 = vsel %vm1129, %v1135, 0.0
    %1137 = vadd.xlane.f32.xlu0 %v1136
    %v1138 = vpop.xlane.xlu0 %1137
    %v1139 = vlog2.pop %v1138
    %v1140 = vmul.f32 %v1139, 0.6931472
    %v1141 = vsub.f32 %v1133, %v1140
    %1142 = vst.msk [vmem:[#allocation4] sm:$0xff] %vm1129, %v1141
    // Predicated region
    $region60: #{lstm_forward_pallas.1} parent=1 // pred_check
      _
    $region61: #{lstm_forward_pallas.1} parent=1 // pred_check_branch
      %1144 = sbr.rel (0) target = $region63
    $region62: #{lstm_forward_pallas.1} parent=1 // pred_region
      %s1146 = ssub.s32 128, 128
      %1147 = vsyncadd [#allocation5], %s1146
      %s1149 = sshll.u32 [#allocation4], 4
      %s1150 = int_to_ptr.vmem [resolvable:$true] %s1149
      %1152 = dma.vmem_to_hbm [thread:$0]  %s1150, 128, %s11, [#allocation5]
    $region63: #{lstm_forward_pallas.1} parent=1 // pred_fallthru
      _
    // Predicated region
    $region64: #{lstm_forward_pallas.1} parent=1 // pred_check
      _
    $region65: #{lstm_forward_pallas.1} parent=1 // pred_check_branch
      %1154 = sbr.rel (0) target = $region67
    $region66: #{lstm_forward_pallas.1} parent=1 // pred_region
      %s1156 = ssub.s32 256, 256
      %1157 = vsyncadd [#allocation7], %s1156
      %s1158 = sshll.u32 [#allocation6], 4
      %s1159 = int_to_ptr.vmem [resolvable:$true] %s1158
      %1164 = dma.vmem_to_hbm [thread:$0]  %s1159, 256, %s12, [#allocation7], 128, 128, 8
    $region67: #{lstm_forward_pallas.1} parent=1 // pred_fallthru
      _
    // Predicated region
    $region68: #{lstm_forward_pallas.1} parent=1 // pred_check
      _
    $region69: #{lstm_forward_pallas.1} parent=1 // pred_check_branch
      %1166 = sbr.rel (0) target = $region71
    $region70: #{lstm_forward_pallas.1} parent=1 // pred_region
      %s1168 = ssub.s32 256, 256
      %1169 = vsyncadd [#allocation7], %s1168
      %s1170 = sshll.u32 [#allocation8], 4
      %s1171 = int_to_ptr.vmem [resolvable:$true] %s1170
      %1176 = dma.vmem_to_hbm [thread:$0]  %s1171, 256, %s13, [#allocation7], 128, 128, 8
    $region71: #{lstm_forward_pallas.1} parent=1 // pred_fallthru
      _
    // Predicated region
    $region72: #{lstm_forward_pallas.1} parent=1 // pred_check
      _
    $region73: #{lstm_forward_pallas.1} parent=1 // pred_check_branch
      %1178 = sbr.rel (0) target = $region75
    $region74: #{lstm_forward_pallas.1} parent=1 // pred_region
      %1179 = dma.done [#allocation5], 128
    $region75: #{lstm_forward_pallas.1} parent=1 // pred_fallthru
      _
    // Predicated region
    $region76: #{lstm_forward_pallas.1} parent=1 // pred_check
      _
    $region77: #{lstm_forward_pallas.1} parent=1 // pred_check_branch
      %1181 = sbr.rel (0) target = $region79
    $region78: #{lstm_forward_pallas.1} parent=1 // pred_region
      %1182 = dma.done [#allocation7], 256
    $region79: #{lstm_forward_pallas.1} parent=1 // pred_fallthru
      _
    // Predicated region
    $region80: #{lstm_forward_pallas.1} parent=1 // pred_check
      _
    $region81: #{lstm_forward_pallas.1} parent=1 // pred_check_branch
      %1184 = sbr.rel (0) target = $region83
    $region82: #{lstm_forward_pallas.1} parent=1 // pred_region
      %1185 = dma.done [#allocation7], 256
    $region83: #{lstm_forward_pallas.1} parent=1 // pred_fallthru
      _
    %1186 = vsyncpa [#allocation5], 1
    %1187 = vsyncpa [#allocation7], 1

</llo_original>
